<compile_context>
chip_gen: v7x
topology: tpu7x:2x2x1
jax: 0.10.0
libtpu: 0.0.40
codegen_flags: <defaults>
</compile_context>

<pallas_src>
import jax
import jax.numpy as jnp
from jax.experimental import pallas as pl
from jax.experimental.pallas import tpu as pltpu

# ---------------------------------------------------------------------------
# Problem sizes (small, consistent with the module's forward)
# ---------------------------------------------------------------------------
B, C, H, W = 4, 8, 16, 16          # batch, channels, spatial
HW = H * W                         # 256 -> lane-dense last dim
DIM = 32                           # feature dimension ("dim" in the module)
PRED_DIM = 16                      # predictor output dimension ("pred_dim")
PRED_PAD = 128                     # pred_dim padded to a full lane width
M_MOMENTUM = 0.996
BN_EPS = 1e-5

_PARAM_KEYS = ("w0", "b0", "gamma", "beta", "w1", "b1")
_VMEM = pl.BlockSpec(memory_space=pltpu.MemorySpace.VMEM)


# ---------------------------------------------------------------------------
# Kernel A: momentum update of the key (target) encoder parameters
#   param_k = m * param_k + (1 - m) * param_q        (elementwise, per leaf)
# ---------------------------------------------------------------------------
def _momentum_kernel(*refs):
    n = len(refs) // 3                       # n q-refs, n k-refs, n out-refs
    for i in range(n):
        q, k, o = refs[i], refs[n + i], refs[2 * n + i]
        o[...] = k[...] * M_MOMENTUM + q[...] * (1.0 - M_MOMENTUM)


def momentum_update(params_q, params_k):
    """Functional BYOL._momentum_update_key_encoder (k aliased in place)."""
    q_leaves = tuple(params_q[k] for k in _PARAM_KEYS)
    k_leaves = tuple(params_k[k] for k in _PARAM_KEYS)
    n = len(k_leaves)
    new_leaves = pl.pallas_call(
        _momentum_kernel,
        out_shape=tuple(jax.ShapeDtypeStruct(l.shape, l.dtype) for l in k_leaves),
        in_specs=[_VMEM] * (2 * n),
        out_specs=tuple([_VMEM] * n),
        # alias each k input onto its output -> in-place EMA, no extra HBM copy
        input_output_aliases={n + i: i for i in range(n)},
    )(*q_leaves, *k_leaves)
    # TODO(synk): for real backbone-sized parameter sets (100s of MiB) this
    # should become a tiled, pipelined streaming kernel (grid + BlockSpec) to
    # stay under v7x's 64 MiB VMEM; at these toy sizes whole-leaf blocks win.
    return dict(zip(_PARAM_KEYS, new_leaves))


# ---------------------------------------------------------------------------
# Shared MLP body: Linear -> BatchNorm1d(train) -> ReLU -> Linear
# ---------------------------------------------------------------------------
def _mlp_bn_relu_linear(x, w0, b0, gamma, beta, w1, b1):
    h = jnp.dot(x, w0, preferred_element_type=jnp.float32) + b0
    # BatchNorm1d in training mode: batch statistics, biased variance
    # (mean-of-squares minus square-of-mean: one pass over h).
    mu = jnp.mean(h, axis=0, keepdims=True)
    ms = jnp.mean(h * h, axis=0, keepdims=True)
    var = ms - mu * mu
    hn = (h - mu) * jax.lax.rsqrt(var + BN_EPS) * gamma + beta   # rsqrt -> EUP
    hn = jnp.maximum(hn, 0.0)
    return jnp.dot(hn, w1, preferred_element_type=jnp.float32) + b1


# ---------------------------------------------------------------------------
# Kernel B: fused per-view forward (grid axis = view index)
#   feat = GAP(x_view); p = predictor(enc_q(feat)); z = enc_k(feat)
# ---------------------------------------------------------------------------
def _byol_fused_kernel(x_ref,
                       qw0, qb0, qg, qbt, qw1, qb1,      # encoder_q fc head
                       kw0, kb0, kg, kbt, kw1, kb1,      # encoder_k fc head
                       pw0, pb0, pg, pbt, pw1, pb1,      # predictor
                       p_ref, z_ref):
    # x_ref: (B, C, H*W) for the current view; GAP = one lane reduction.
    feat = jnp.mean(x_ref[...], axis=-1)                 # (B, C)

    # online path: encoder_q -> predictor.  The (B, PRED_PAD) intermediate
    # lives only in VMEM/vregs -- no HBM round-trip between the two MLPs.
    zq = _mlp_bn_relu_linear(feat, qw0[...], qb0[...], qg[...], qbt[...],
                             qw1[...], qb1[...])
    p_ref[...] = _mlp_bn_relu_linear(zq, pw0[...], pb0[...], pg[...], pbt[...],
                                     pw1[...], pb1[...])

    # target path: encoder_k (detached outside the kernel)
    z_ref[...] = _mlp_bn_relu_linear(feat, kw0[...], kb0[...], kg[...],
                                     kbt[...], kw1[...], kb1[...])


def _resident_spec(a):
    # full-array block, constant block index -> weight stays resident in VMEM
    # across both grid steps (no re-DMA between views).
    nd = a.ndim
    return pl.BlockSpec(a.shape, lambda i, _nd=nd: (0,) * _nd)


def byol_fused_forward(xv, enc_q, enc_k, pred):
    """xv: (2, B, C, H*W) stacked views.  Returns padded (2, B, PRED_PAD) p, z."""
    weights = []
    for prm in (enc_q, enc_k, pred):
        weights += [prm[k] for k in _PARAM_KEYS]

    x_spec = pl.BlockSpec((pl.Squeezed(), B, C, HW), lambda i: (i, 0, 0, 0))
    out_spec_p = pl.BlockSpec((pl.Squeezed(), B, PRED_PAD), lambda i: (i, 0, 0))
    out_spec_z = pl.BlockSpec((pl.Squeezed(), B, PRED_PAD), lambda i: (i, 0, 0))

    return pl.pallas_call(
        _byol_fused_kernel,
        out_shape=(jax.ShapeDtypeStruct((2, B, PRED_PAD), jnp.float32),
                   jax.ShapeDtypeStruct((2, B, PRED_PAD), jnp.float32)),
        grid=(2,),
        in_specs=[x_spec] + [_resident_spec(w) for w in weights],
        out_specs=(out_spec_p, out_spec_z),
        compiler_params=pltpu.CompilerParams(
            dimension_semantics=("parallel",)),   # views are independent
    )(xv, *weights)


# ---------------------------------------------------------------------------
# Parameter construction (deterministic, synthetic)
# ---------------------------------------------------------------------------
def _init_mlp_params(key, in_dim, hidden_dim, out_dim, in_store, out_store):
    """Linear(in,hidden) -> BN(hidden) -> ReLU -> Linear(hidden,out); the
    weight matrices are stored at lane-dense padded sizes, padding is zero
    (and stays zero under the momentum EMA), so the math is exact."""
    k0, k1 = jax.random.split(key)
    w0 = jnp.zeros((in_store, hidden_dim), jnp.float32).at[:in_dim, :].set(
        0.05 * jax.random.normal(k0, (in_dim, hidden_dim), jnp.float32))
    w1 = jnp.zeros((hidden_dim, out_store), jnp.float32).at[:, :out_dim].set(
        0.05 * jax.random.normal(k1, (hidden_dim, out_dim), jnp.float32))
    return {
        "w0": w0,
        "b0": jnp.zeros((1, hidden_dim), jnp.float32),
        "gamma": jnp.ones((1, hidden_dim), jnp.float32),
        "beta": jnp.zeros((1, hidden_dim), jnp.float32),
        "w1": w1,
        "b1": jnp.zeros((1, out_store), jnp.float32),
    }


def init_byol_params(key):
    kq, kk, kp = jax.random.split(key, 3)
    return {
        # TODO(synk): the external encoder_q / encoder_k backbones are
        # arbitrary user-supplied networks; modeled here as a global-average-
        # pool stem + the fc head the module installs (Linear->BN->ReLU->Linear).
        "enc_q": _init_mlp_params(kq, C, DIM, PRED_DIM, C, PRED_PAD),
        "enc_k": _init_mlp_params(kk, C, DIM, PRED_DIM, C, PRED_PAD),
        "pred": _init_mlp_params(kp, PRED_DIM, DIM, PRED_DIM, PRED_PAD, PRED_PAD),
    }


# ---------------------------------------------------------------------------
# BYOL forward (functional): returns (p1, p2, z1, z2) and updated target params
# ---------------------------------------------------------------------------
@jax.jit
def byol_forward(params, x1, x2):
    enc_q, pred = params["enc_q"], params["pred"]

    # with torch.no_grad(): self._momentum_update_key_encoder()
    enc_k = momentum_update(enc_q, params["enc_k"])

    # lane-dense image layout: (views, B, C, H*W)
    xv = jnp.stack([x1.reshape(B, C, HW), x2.reshape(B, C, HW)], axis=0)

    p_pad, z_pad = byol_fused_forward(xv, enc_q, enc_k, pred)
    p1, p2 = p_pad[0, :, :PRED_DIM], p_pad[1, :, :PRED_DIM]
    # z1, z2 are .detach()'d in the torch module
    z1 = jax.lax.stop_gradient(z_pad[0, :, :PRED_DIM])
    z2 = jax.lax.stop_gradient(z_pad[1, :, :PRED_DIM])
    return (p1, p2, z1, z2), enc_k


# ---------------------------------------------------------------------------
if __name__ == "__main__":
    key = jax.random.PRNGKey(0)
    kx1, kx2, kparams = jax.random.split(key, 3)

    x1 = jax.random.normal(kx1, (B, C, H, W), jnp.float32)   # NCHW
    x2 = jax.random.normal(kx2, (B, C, H, W), jnp.float32)   # NCHW
    params = init_byol_params(kparams)

    (p1, p2, z1, z2), enc_k_new = byol_forward(params, x1, x2)
    jax.block_until_ready((p1, p2, z1, z2, enc_k_new))

    assert p1.shape == (B, PRED_DIM) and p2.shape == (B, PRED_DIM)
    assert z1.shape == (B, PRED_DIM) and z2.shape == (B, PRED_DIM)
    print("KERNEL_OK")
</pallas_src>

<mosaic_0001>
module attributes {stable_mosaic.version = 11 : i64} {
  func.func @_momentum_kernel(%arg0: memref<8x32xf32, #tpu.memory_space<vmem>>, %arg1: memref<1x32xf32, #tpu.memory_space<vmem>>, %arg2: memref<1x32xf32, #tpu.memory_space<vmem>>, %arg3: memref<1x32xf32, #tpu.memory_space<vmem>>, %arg4: memref<32x128xf32, #tpu.memory_space<vmem>>, %arg5: memref<1x128xf32, #tpu.memory_space<vmem>>, %arg6: memref<8x32xf32, #tpu.memory_space<vmem>>, %arg7: memref<1x32xf32, #tpu.memory_space<vmem>>, %arg8: memref<1x32xf32, #tpu.memory_space<vmem>>, %arg9: memref<1x32xf32, #tpu.memory_space<vmem>>, %arg10: memref<32x128xf32, #tpu.memory_space<vmem>>, %arg11: memref<1x128xf32, #tpu.memory_space<vmem>>, %arg12: memref<8x32xf32, #tpu.memory_space<vmem>>, %arg13: memref<1x32xf32, #tpu.memory_space<vmem>>, %arg14: memref<1x32xf32, #tpu.memory_space<vmem>>, %arg15: memref<1x32xf32, #tpu.memory_space<vmem>>, %arg16: memref<32x128xf32, #tpu.memory_space<vmem>>, %arg17: memref<1x128xf32, #tpu.memory_space<vmem>>) attributes {dimension_semantics = [], scalar_prefetch = 0 : i64, scratch_operands = 0 : i64, tpu.core_type = #tpu.core_type<tc>} {
    %c0 = arith.constant 0 : index
    %c0_0 = arith.constant 0 : index
    %0 = vector.load %arg6[%c0, %c0_0] : memref<8x32xf32, #tpu.memory_space<vmem>>, vector<8x32xf32>
    %cst = arith.constant 0.995999991 : f32
    %1 = vector.broadcast %cst : f32 to vector<8x32xf32>
    %2 = arith.mulf %0, %1 : vector<8x32xf32>
    %c0_1 = arith.constant 0 : index
    %c0_2 = arith.constant 0 : index
    %3 = vector.load %arg0[%c0_1, %c0_2] : memref<8x32xf32, #tpu.memory_space<vmem>>, vector<8x32xf32>
    %cst_3 = arith.constant 4.000000e-03 : f32
    %4 = vector.broadcast %cst_3 : f32 to vector<8x32xf32>
    %5 = arith.mulf %3, %4 : vector<8x32xf32>
    %6 = arith.addf %2, %5 : vector<8x32xf32>
    %c0_4 = arith.constant 0 : index
    %c0_5 = arith.constant 0 : index
    %7 = vector.load %arg12[%c0_4, %c0_5] : memref<8x32xf32, #tpu.memory_space<vmem>>, vector<8x32xf32>
    tpu.vector_store %arg12[%c0_4, %c0_5], %6 {strides = array<i32>} : memref<8x32xf32, #tpu.memory_space<vmem>>, vector<8x32xf32>,
    %c0_6 = arith.constant 0 : index
    %c0_7 = arith.constant 0 : index
    %8 = vector.load %arg7[%c0_6, %c0_7] : memref<1x32xf32, #tpu.memory_space<vmem>>, vector<1x32xf32>
    %cst_8 = arith.constant 0.995999991 : f32
    %9 = vector.broadcast %cst_8 : f32 to vector<1x32xf32>
    %10 = arith.mulf %8, %9 : vector<1x32xf32>
    %c0_9 = arith.constant 0 : index
    %c0_10 = arith.constant 0 : index
    %11 = vector.load %arg1[%c0_9, %c0_10] : memref<1x32xf32, #tpu.memory_space<vmem>>, vector<1x32xf32>
    %cst_11 = arith.constant 4.000000e-03 : f32
    %12 = vector.broadcast %cst_11 : f32 to vector<1x32xf32>
    %13 = arith.mulf %11, %12 : vector<1x32xf32>
    %14 = arith.addf %10, %13 : vector<1x32xf32>
    %c0_12 = arith.constant 0 : index
    %c0_13 = arith.constant 0 : index
    %15 = vector.load %arg13[%c0_12, %c0_13] : memref<1x32xf32, #tpu.memory_space<vmem>>, vector<1x32xf32>
    tpu.vector_store %arg13[%c0_12, %c0_13], %14 {strides = array<i32>} : memref<1x32xf32, #tpu.memory_space<vmem>>, vector<1x32xf32>,
    %c0_14 = arith.constant 0 : index
    %c0_15 = arith.constant 0 : index
    %16 = vector.load %arg8[%c0_14, %c0_15] : memref<1x32xf32, #tpu.memory_space<vmem>>, vector<1x32xf32>
    %cst_16 = arith.constant 0.995999991 : f32
    %17 = vector.broadcast %cst_16 : f32 to vector<1x32xf32>
    %18 = arith.mulf %16, %17 : vector<1x32xf32>
    %c0_17 = arith.constant 0 : index
    %c0_18 = arith.constant 0 : index
    %19 = vector.load %arg2[%c0_17, %c0_18] : memref<1x32xf32, #tpu.memory_space<vmem>>, vector<1x32xf32>
    %cst_19 = arith.constant 4.000000e-03 : f32
    %20 = vector.broadcast %cst_19 : f32 to vector<1x32xf32>
    %21 = arith.mulf %19, %20 : vector<1x32xf32>
    %22 = arith.addf %18, %21 : vector<1x32xf32>
    %c0_20 = arith.constant 0 : index
    %c0_21 = arith.constant 0 : index
    %23 = vector.load %arg14[%c0_20, %c0_21] : memref<1x32xf32, #tpu.memory_space<vmem>>, vector<1x32xf32>
    tpu.vector_store %arg14[%c0_20, %c0_21], %22 {strides = array<i32>} : memref<1x32xf32, #tpu.memory_space<vmem>>, vector<1x32xf32>,
    %c0_22 = arith.constant 0 : index
    %c0_23 = arith.constant 0 : index
    %24 = vector.load %arg9[%c0_22, %c0_23] : memref<1x32xf32, #tpu.memory_space<vmem>>, vector<1x32xf32>
    %cst_24 = arith.constant 0.995999991 : f32
    %25 = vector.broadcast %cst_24 : f32 to vector<1x32xf32>
    %26 = arith.mulf %24, %25 : vector<1x32xf32>
    %c0_25 = arith.constant 0 : index
    %c0_26 = arith.constant 0 : index
    %27 = vector.load %arg3[%c0_25, %c0_26] : memref<1x32xf32, #tpu.memory_space<vmem>>, vector<1x32xf32>
    %cst_27 = arith.constant 4.000000e-03 : f32
    %28 = vector.broadcast %cst_27 : f32 to vector<1x32xf32>
    %29 = arith.mulf %27, %28 : vector<1x32xf32>
    %30 = arith.addf %26, %29 : vector<1x32xf32>
    %c0_28 = arith.constant 0 : index
    %c0_29 = arith.constant 0 : index
    %31 = vector.load %arg15[%c0_28, %c0_29] : memref<1x32xf32, #tpu.memory_space<vmem>>, vector<1x32xf32>
    tpu.vector_store %arg15[%c0_28, %c0_29], %30 {strides = array<i32>} : memref<1x32xf32, #tpu.memory_space<vmem>>, vector<1x32xf32>,
    %c0_30 = arith.constant 0 : index
    %c0_31 = arith.constant 0 : index
    %32 = vector.load %arg10[%c0_30, %c0_31] : memref<32x128xf32, #tpu.memory_space<vmem>>, vector<32x128xf32>
    %cst_32 = arith.constant 0.995999991 : f32
    %33 = vector.broadcast %cst_32 : f32 to vector<32x128xf32>
    %34 = arith.mulf %32, %33 : vector<32x128xf32>
    %c0_33 = arith.constant 0 : index
    %c0_34 = arith.constant 0 : index
    %35 = vector.load %arg4[%c0_33, %c0_34] : memref<32x128xf32, #tpu.memory_space<vmem>>, vector<32x128xf32>
    %cst_35 = arith.constant 4.000000e-03 : f32
    %36 = vector.broadcast %cst_35 : f32 to vector<32x128xf32>
    %37 = arith.mulf %35, %36 : vector<32x128xf32>
    %38 = arith.addf %34, %37 : vector<32x128xf32>
    %c0_36 = arith.constant 0 : index
    %c0_37 = arith.constant 0 : index
    %39 = vector.load %arg16[%c0_36, %c0_37] : memref<32x128xf32, #tpu.memory_space<vmem>>, vector<32x128xf32>
    tpu.vector_store %arg16[%c0_36, %c0_37], %38 {strides = array<i32>} : memref<32x128xf32, #tpu.memory_space<vmem>>, vector<32x128xf32>,
    %c0_38 = arith.constant 0 : index
    %c0_39 = arith.constant 0 : index
    %40 = vector.load %arg11[%c0_38, %c0_39] : memref<1x128xf32, #tpu.memory_space<vmem>>, vector<1x128xf32>
    %cst_40 = arith.constant 0.995999991 : f32
    %41 = vector.broadcast %cst_40 : f32 to vector<1x128xf32>
    %42 = arith.mulf %40, %41 : vector<1x128xf32>
    %c0_41 = arith.constant 0 : index
    %c0_42 = arith.constant 0 : index
    %43 = vector.load %arg5[%c0_41, %c0_42] : memref<1x128xf32, #tpu.memory_space<vmem>>, vector<1x128xf32>
    %cst_43 = arith.constant 4.000000e-03 : f32
    %44 = vector.broadcast %cst_43 : f32 to vector<1x128xf32>
    %45 = arith.mulf %43, %44 : vector<1x128xf32>
    %46 = arith.addf %42, %45 : vector<1x128xf32>
    %c0_44 = arith.constant 0 : index
    %c0_45 = arith.constant 0 : index
    %47 = vector.load %arg17[%c0_44, %c0_45] : memref<1x128xf32, #tpu.memory_space<vmem>>, vector<1x128xf32>
    tpu.vector_store %arg17[%c0_44, %c0_45], %46 {strides = array<i32>} : memref<1x128xf32, #tpu.memory_space<vmem>>, vector<1x128xf32>,
    return
  }
}

module attributes {stable_mosaic.version = 11 : i64} {
  func.func @_byol_fused_kernel(%arg0: i32, %arg1: memref<1x4x8x256xf32, #tpu.memory_space<vmem>>, %arg2: memref<8x32xf32, #tpu.memory_space<vmem>>, %arg3: memref<1x32xf32, #tpu.memory_space<vmem>>, %arg4: memref<1x32xf32, #tpu.memory_space<vmem>>, %arg5: memref<1x32xf32, #tpu.memory_space<vmem>>, %arg6: memref<32x128xf32, #tpu.memory_space<vmem>>, %arg7: memref<1x128xf32, #tpu.memory_space<vmem>>, %arg8: memref<8x32xf32, #tpu.memory_space<vmem>>, %arg9: memref<1x32xf32, #tpu.memory_space<vmem>>, %arg10: memref<1x32xf32, #tpu.memory_space<vmem>>, %arg11: memref<1x32xf32, #tpu.memory_space<vmem>>, %arg12: memref<32x128xf32, #tpu.memory_space<vmem>>, %arg13: memref<1x128xf32, #tpu.memory_space<vmem>>, %arg14: memref<128x32xf32, #tpu.memory_space<vmem>>, %arg15: memref<1x32xf32, #tpu.memory_space<vmem>>, %arg16: memref<1x32xf32, #tpu.memory_space<vmem>>, %arg17: memref<1x32xf32, #tpu.memory_space<vmem>>, %arg18: memref<32x128xf32, #tpu.memory_space<vmem>>, %arg19: memref<1x128xf32, #tpu.memory_space<vmem>>, %arg20: memref<1x4x128xf32, #tpu.memory_space<vmem>>, %arg21: memref<1x4x128xf32, #tpu.memory_space<vmem>>) attributes {dimension_semantics = [#tpu.dimension_semantics<parallel>], iteration_bounds = array<i64: 2>, scalar_prefetch = 0 : i64, scratch_operands = 0 : i64, tpu.core_type = #tpu.core_type<tc>, window_params = [{transform_indices = @transform_0, window_bounds = array<i64: 1, 4, 8, 256>}, {pipeline_mode = #tpu.pipeline_mode<synchronous>, transform_indices = @transform_1, window_bounds = array<i64: 8, 32>}, {pipeline_mode = #tpu.pipeline_mode<synchronous>, transform_indices = @transform_2, window_bounds = array<i64: 1, 32>}, {pipeline_mode = #tpu.pipeline_mode<synchronous>, transform_indices = @transform_3, window_bounds = array<i64: 1, 32>}, {pipeline_mode = #tpu.pipeline_mode<synchronous>, transform_indices = @transform_4, window_bounds = array<i64: 1, 32>}, {pipeline_mode = #tpu.pipeline_mode<synchronous>, transform_indices = @transform_5, window_bounds = array<i64: 32, 128>}, {pipeline_mode = #tpu.pipeline_mode<synchronous>, transform_indices = @transform_6, window_bounds = array<i64: 1, 128>}, {pipeline_mode = #tpu.pipeline_mode<synchronous>, transform_indices = @transform_7, window_bounds = array<i64: 8, 32>}, {pipeline_mode = #tpu.pipeline_mode<synchronous>, transform_indices = @transform_8, window_bounds = array<i64: 1, 32>}, {pipeline_mode = #tpu.pipeline_mode<synchronous>, transform_indices = @transform_9, window_bounds = array<i64: 1, 32>}, {pipeline_mode = #tpu.pipeline_mode<synchronous>, transform_indices = @transform_10, window_bounds = array<i64: 1, 32>}, {pipeline_mode = #tpu.pipeline_mode<synchronous>, transform_indices = @transform_11, window_bounds = array<i64: 32, 128>}, {pipeline_mode = #tpu.pipeline_mode<synchronous>, transform_indices = @transform_12, window_bounds = array<i64: 1, 128>}, {pipeline_mode = #tpu.pipeline_mode<synchronous>, transform_indices = @transform_13, window_bounds = array<i64: 128, 32>}, {pipeline_mode = #tpu.pipeline_mode<synchronous>, transform_indices = @transform_14, window_bounds = array<i64: 1, 32>}, {pipeline_mode = #tpu.pipeline_mode<synchronous>, transform_indices = @transform_15, window_bounds = array<i64: 1, 32>}, {pipeline_mode = #tpu.pipeline_mode<synchronous>, transform_indices = @transform_16, window_bounds = array<i64: 1, 32>}, {pipeline_mode = #tpu.pipeline_mode<synchronous>, transform_indices = @transform_17, window_bounds = array<i64: 32, 128>}, {pipeline_mode = #tpu.pipeline_mode<synchronous>, transform_indices = @transform_18, window_bounds = array<i64: 1, 128>}, {transform_indices = @transform_19, window_bounds = array<i64: 1, 4, 128>}, {transform_indices = @transform_20, window_bounds = array<i64: 1, 4, 128>}]} {
    %c0 = arith.constant 0 : index
    %c0_0 = arith.constant 0 : index
    %c0_1 = arith.constant 0 : index
    %c0_2 = arith.constant 0 : index
    %0 = vector.load %arg1[%c0, %c0_0, %c0_1, %c0_2] : memref<1x4x8x256xf32, #tpu.memory_space<vmem>>, vector<1x4x8x256xf32>
    %1 = vector.shape_cast %0 : vector<1x4x8x256xf32> to vector<4x8x256xf32>
    %cst = arith.constant dense<0.000000e+00> : vector<4x8xf32>
    %2 = vector.multi_reduction <add>, %1, %cst [2] : vector<4x8x256xf32> to vector<4x8xf32>
    %cst_3 = arith.constant 2.560000e+02 : f32
    %3 = vector.broadcast %cst_3 : f32 to vector<4x8xf32>
    %4 = arith.divf %2, %3 : vector<4x8xf32>
    %c0_4 = arith.constant 0 : index
    %c0_5 = arith.constant 0 : index
    %5 = vector.load %arg2[%c0_4, %c0_5] : memref<8x32xf32, #tpu.memory_space<vmem>>, vector<8x32xf32>
    %c0_6 = arith.constant 0 : index
    %c0_7 = arith.constant 0 : index
    %6 = vector.load %arg3[%c0_6, %c0_7] : memref<1x32xf32, #tpu.memory_space<vmem>>, vector<1x32xf32>
    %c0_8 = arith.constant 0 : index
    %c0_9 = arith.constant 0 : index
    %7 = vector.load %arg4[%c0_8, %c0_9] : memref<1x32xf32, #tpu.memory_space<vmem>>, vector<1x32xf32>
    %c0_10 = arith.constant 0 : index
    %c0_11 = arith.constant 0 : index
    %8 = vector.load %arg5[%c0_10, %c0_11] : memref<1x32xf32, #tpu.memory_space<vmem>>, vector<1x32xf32>
    %c0_12 = arith.constant 0 : index
    %c0_13 = arith.constant 0 : index
    %9 = vector.load %arg6[%c0_12, %c0_13] : memref<32x128xf32, #tpu.memory_space<vmem>>, vector<32x128xf32>
    %c0_14 = arith.constant 0 : index
    %c0_15 = arith.constant 0 : index
    %10 = vector.load %arg7[%c0_14, %c0_15] : memref<1x128xf32, #tpu.memory_space<vmem>>, vector<1x128xf32>
    %cst_16 = arith.constant dense<0.000000e+00> : vector<4x32xf32>
    %11 = tpu.matmul %4, %5, %cst_16 {dimension_numbers = #tpu.dot_dimension_numbers<[1], [0], [0], [1], [0, 0, 1, 1], [], []>} : vector<4x8xf32>, vector<8x32xf32>, vector<4x32xf32> -> vector<4x32xf32>
    %12 = vector.broadcast %6 : vector<1x32xf32> to vector<4x32xf32>
    %13 = arith.addf %11, %12 : vector<4x32xf32>
    %cst_17 = arith.constant dense<0.000000e+00> : vector<32xf32>
    %14 = vector.multi_reduction <add>, %13, %cst_17 [0] : vector<4x32xf32> to vector<32xf32>
    %15 = vector.shape_cast %14 : vector<32xf32> to vector<1x32xf32>
    %cst_18 = arith.constant 4.000000e+00 : f32
    %16 = vector.broadcast %cst_18 : f32 to vector<1x32xf32>
    %17 = arith.divf %15, %16 : vector<1x32xf32>
    %18 = arith.mulf %13, %13 : vector<4x32xf32>
    %cst_19 = arith.constant dense<0.000000e+00> : vector<32xf32>
    %19 = vector.multi_reduction <add>, %18, %cst_19 [0] : vector<4x32xf32> to vector<32xf32>
    %20 = vector.shape_cast %19 : vector<32xf32> to vector<1x32xf32>
    %cst_20 = arith.constant 4.000000e+00 : f32
    %21 = vector.broadcast %cst_20 : f32 to vector<1x32xf32>
    %22 = arith.divf %20, %21 : vector<1x32xf32>
    %23 = arith.mulf %17, %17 : vector<1x32xf32>
    %24 = arith.subf %22, %23 : vector<1x32xf32>
    %25 = vector.broadcast %17 : vector<1x32xf32> to vector<4x32xf32>
    %26 = arith.subf %13, %25 : vector<4x32xf32>
    %cst_21 = arith.constant 9.99999974E-6 : f32
    %27 = vector.broadcast %cst_21 : f32 to vector<1x32xf32>
    %28 = arith.addf %24, %27 : vector<1x32xf32>
    %29 = math.rsqrt %28 : vector<1x32xf32>
    %30 = vector.broadcast %29 : vector<1x32xf32> to vector<4x32xf32>
    %31 = arith.mulf %26, %30 : vector<4x32xf32>
    %32 = vector.broadcast %7 : vector<1x32xf32> to vector<4x32xf32>
    %33 = arith.mulf %31, %32 : vector<4x32xf32>
    %34 = vector.broadcast %8 : vector<1x32xf32> to vector<4x32xf32>
    %35 = arith.addf %33, %34 : vector<4x32xf32>
    %cst_22 = arith.constant 0.000000e+00 : f32
    %36 = vector.broadcast %cst_22 : f32 to vector<4x32xf32>
    %37 = arith.maximumf %35, %36 : vector<4x32xf32>
    %cst_23 = arith.constant dense<0.000000e+00> : vector<4x128xf32>
    %38 = tpu.matmul %37, %9, %cst_23 {dimension_numbers = #tpu.dot_dimension_numbers<[1], [0], [0], [1], [0, 0, 1, 1], [], []>} : vector<4x32xf32>, vector<32x128xf32>, vector<4x128xf32> -> vector<4x128xf32>
    %39 = vector.broadcast %10 : vector<1x128xf32> to vector<4x128xf32>
    %40 = arith.addf %38, %39 : vector<4x128xf32>
    %c0_24 = arith.constant 0 : index
    %c0_25 = arith.constant 0 : index
    %41 = vector.load %arg14[%c0_24, %c0_25] : memref<128x32xf32, #tpu.memory_space<vmem>>, vector<128x32xf32>
    %c0_26 = arith.constant 0 : index
    %c0_27 = arith.constant 0 : index
    %42 = vector.load %arg15[%c0_26, %c0_27] : memref<1x32xf32, #tpu.memory_space<vmem>>, vector<1x32xf32>
    %c0_28 = arith.constant 0 : index
    %c0_29 = arith.constant 0 : index
    %43 = vector.load %arg16[%c0_28, %c0_29] : memref<1x32xf32, #tpu.memory_space<vmem>>, vector<1x32xf32>
    %c0_30 = arith.constant 0 : index
    %c0_31 = arith.constant 0 : index
    %44 = vector.load %arg17[%c0_30, %c0_31] : memref<1x32xf32, #tpu.memory_space<vmem>>, vector<1x32xf32>
    %c0_32 = arith.constant 0 : index
    %c0_33 = arith.constant 0 : index
    %45 = vector.load %arg18[%c0_32, %c0_33] : memref<32x128xf32, #tpu.memory_space<vmem>>, vector<32x128xf32>
    %c0_34 = arith.constant 0 : index
    %c0_35 = arith.constant 0 : index
    %46 = vector.load %arg19[%c0_34, %c0_35] : memref<1x128xf32, #tpu.memory_space<vmem>>, vector<1x128xf32>
    %cst_36 = arith.constant dense<0.000000e+00> : vector<4x32xf32>
    %47 = tpu.matmul %40, %41, %cst_36 {dimension_numbers = #tpu.dot_dimension_numbers<[1], [0], [0], [1], [0, 0, 1, 1], [], []>} : vector<4x128xf32>, vector<128x32xf32>, vector<4x32xf32> -> vector<4x32xf32>
    %48 = vector.broadcast %42 : vector<1x32xf32> to vector<4x32xf32>
    %49 = arith.addf %47, %48 : vector<4x32xf32>
    %cst_37 = arith.constant dense<0.000000e+00> : vector<32xf32>
    %50 = vector.multi_reduction <add>, %49, %cst_37 [0] : vector<4x32xf32> to vector<32xf32>
    %51 = vector.shape_cast %50 : vector<32xf32> to vector<1x32xf32>
    %cst_38 = arith.constant 4.000000e+00 : f32
    %52 = vector.broadcast %cst_38 : f32 to vector<1x32xf32>
    %53 = arith.divf %51, %52 : vector<1x32xf32>
    %54 = arith.mulf %49, %49 : vector<4x32xf32>
    %cst_39 = arith.constant dense<0.000000e+00> : vector<32xf32>
    %55 = vector.multi_reduction <add>, %54, %cst_39 [0] : vector<4x32xf32> to vector<32xf32>
    %56 = vector.shape_cast %55 : vector<32xf32> to vector<1x32xf32>
    %cst_40 = arith.constant 4.000000e+00 : f32
    %57 = vector.broadcast %cst_40 : f32 to vector<1x32xf32>
    %58 = arith.divf %56, %57 : vector<1x32xf32>
    %59 = arith.mulf %53, %53 : vector<1x32xf32>
    %60 = arith.subf %58, %59 : vector<1x32xf32>
    %61 = vector.broadcast %53 : vector<1x32xf32> to vector<4x32xf32>
    %62 = arith.subf %49, %61 : vector<4x32xf32>
    %cst_41 = arith.constant 9.99999974E-6 : f32
    %63 = vector.broadcast %cst_41 : f32 to vector<1x32xf32>
    %64 = arith.addf %60, %63 : vector<1x32xf32>
    %65 = math.rsqrt %64 : vector<1x32xf32>
    %66 = vector.broadcast %65 : vector<1x32xf32> to vector<4x32xf32>
    %67 = arith.mulf %62, %66 : vector<4x32xf32>
    %68 = vector.broadcast %43 : vector<1x32xf32> to vector<4x32xf32>
    %69 = arith.mulf %67, %68 : vector<4x32xf32>
    %70 = vector.broadcast %44 : vector<1x32xf32> to vector<4x32xf32>
    %71 = arith.addf %69, %70 : vector<4x32xf32>
    %cst_42 = arith.constant 0.000000e+00 : f32
    %72 = vector.broadcast %cst_42 : f32 to vector<4x32xf32>
    %73 = arith.maximumf %71, %72 : vector<4x32xf32>
    %cst_43 = arith.constant dense<0.000000e+00> : vector<4x128xf32>
    %74 = tpu.matmul %73, %45, %cst_43 {dimension_numbers = #tpu.dot_dimension_numbers<[1], [0], [0], [1], [0, 0, 1, 1], [], []>} : vector<4x32xf32>, vector<32x128xf32>, vector<4x128xf32> -> vector<4x128xf32>
    %75 = vector.broadcast %46 : vector<1x128xf32> to vector<4x128xf32>
    %76 = arith.addf %74, %75 : vector<4x128xf32>
    %c0_44 = arith.constant 0 : index
    %c0_45 = arith.constant 0 : index
    %c0_46 = arith.constant 0 : index
    %77 = vector.load %arg20[%c0_44, %c0_45, %c0_46] : memref<1x4x128xf32, #tpu.memory_space<vmem>>, vector<1x4x128xf32>
    %78 = vector.shape_cast %77 : vector<1x4x128xf32> to vector<4x128xf32>
    %79 = vector.shape_cast %76 : vector<4x128xf32> to vector<1x4x128xf32>
    tpu.vector_store %arg20[%c0_44, %c0_45, %c0_46], %79 {strides = array<i32>} : memref<1x4x128xf32, #tpu.memory_space<vmem>>, vector<1x4x128xf32>,
    %c0_47 = arith.constant 0 : index
    %c0_48 = arith.constant 0 : index
    %80 = vector.load %arg8[%c0_47, %c0_48] : memref<8x32xf32, #tpu.memory_space<vmem>>, vector<8x32xf32>
    %c0_49 = arith.constant 0 : index
    %c0_50 = arith.constant 0 : index
    %81 = vector.load %arg9[%c0_49, %c0_50] : memref<1x32xf32, #tpu.memory_space<vmem>>, vector<1x32xf32>
    %c0_51 = arith.constant 0 : index
    %c0_52 = arith.constant 0 : index
    %82 = vector.load %arg10[%c0_51, %c0_52] : memref<1x32xf32, #tpu.memory_space<vmem>>, vector<1x32xf32>
    %c0_53 = arith.constant 0 : index
    %c0_54 = arith.constant 0 : index
    %83 = vector.load %arg11[%c0_53, %c0_54] : memref<1x32xf32, #tpu.memory_space<vmem>>, vector<1x32xf32>
    %c0_55 = arith.constant 0 : index
    %c0_56 = arith.constant 0 : index
    %84 = vector.load %arg12[%c0_55, %c0_56] : memref<32x128xf32, #tpu.memory_space<vmem>>, vector<32x128xf32>
    %c0_57 = arith.constant 0 : index
    %c0_58 = arith.constant 0 : index
    %85 = vector.load %arg13[%c0_57, %c0_58] : memref<1x128xf32, #tpu.memory_space<vmem>>, vector<1x128xf32>
    %cst_59 = arith.constant dense<0.000000e+00> : vector<4x32xf32>
    %86 = tpu.matmul %4, %80, %cst_59 {dimension_numbers = #tpu.dot_dimension_numbers<[1], [0], [0], [1], [0, 0, 1, 1], [], []>} : vector<4x8xf32>, vector<8x32xf32>, vector<4x32xf32> -> vector<4x32xf32>
    %87 = vector.broadcast %81 : vector<1x32xf32> to vector<4x32xf32>
    %88 = arith.addf %86, %87 : vector<4x32xf32>
    %cst_60 = arith.constant dense<0.000000e+00> : vector<32xf32>
    %89 = vector.multi_reduction <add>, %88, %cst_60 [0] : vector<4x32xf32> to vector<32xf32>
    %90 = vector.shape_cast %89 : vector<32xf32> to vector<1x32xf32>
    %cst_61 = arith.constant 4.000000e+00 : f32
    %91 = vector.broadcast %cst_61 : f32 to vector<1x32xf32>
    %92 = arith.divf %90, %91 : vector<1x32xf32>
    %93 = arith.mulf %88, %88 : vector<4x32xf32>
    %cst_62 = arith.constant dense<0.000000e+00> : vector<32xf32>
    %94 = vector.multi_reduction <add>, %93, %cst_62 [0] : vector<4x32xf32> to vector<32xf32>
    %95 = vector.shape_cast %94 : vector<32xf32> to vector<1x32xf32>
    %cst_63 = arith.constant 4.000000e+00 : f32
    %96 = vector.broadcast %cst_63 : f32 to vector<1x32xf32>
    %97 = arith.divf %95, %96 : vector<1x32xf32>
    %98 = arith.mulf %92, %92 : vector<1x32xf32>
    %99 = arith.subf %97, %98 : vector<1x32xf32>
    %100 = vector.broadcast %92 : vector<1x32xf32> to vector<4x32xf32>
    %101 = arith.subf %88, %100 : vector<4x32xf32>
    %cst_64 = arith.constant 9.99999974E-6 : f32
    %102 = vector.broadcast %cst_64 : f32 to vector<1x32xf32>
    %103 = arith.addf %99, %102 : vector<1x32xf32>
    %104 = math.rsqrt %103 : vector<1x32xf32>
    %105 = vector.broadcast %104 : vector<1x32xf32> to vector<4x32xf32>
    %106 = arith.mulf %101, %105 : vector<4x32xf32>
    %107 = vector.broadcast %82 : vector<1x32xf32> to vector<4x32xf32>
    %108 = arith.mulf %106, %107 : vector<4x32xf32>
    %109 = vector.broadcast %83 : vector<1x32xf32> to vector<4x32xf32>
    %110 = arith.addf %108, %109 : vector<4x32xf32>
    %cst_65 = arith.constant 0.000000e+00 : f32
    %111 = vector.broadcast %cst_65 : f32 to vector<4x32xf32>
    %112 = arith.maximumf %110, %111 : vector<4x32xf32>
    %cst_66 = arith.constant dense<0.000000e+00> : vector<4x128xf32>
    %113 = tpu.matmul %112, %84, %cst_66 {dimension_numbers = #tpu.dot_dimension_numbers<[1], [0], [0], [1], [0, 0, 1, 1], [], []>} : vector<4x32xf32>, vector<32x128xf32>, vector<4x128xf32> -> vector<4x128xf32>
    %114 = vector.broadcast %85 : vector<1x128xf32> to vector<4x128xf32>
    %115 = arith.addf %113, %114 : vector<4x128xf32>
    %c0_67 = arith.constant 0 : index
    %c0_68 = arith.constant 0 : index
    %c0_69 = arith.constant 0 : index
    %116 = vector.load %arg21[%c0_67, %c0_68, %c0_69] : memref<1x4x128xf32, #tpu.memory_space<vmem>>, vector<1x4x128xf32>
    %117 = vector.shape_cast %116 : vector<1x4x128xf32> to vector<4x128xf32>
    %118 = vector.shape_cast %115 : vector<4x128xf32> to vector<1x4x128xf32>
    tpu.vector_store %arg21[%c0_67, %c0_68, %c0_69], %118 {strides = array<i32>} : memref<1x4x128xf32, #tpu.memory_space<vmem>>, vector<1x4x128xf32>,
    return
  }
  func.func @transform_0(%arg0: i32) -> (i32, i32, i32, i32) {
    %c0_i32 = arith.constant 0 : i32
    %c0_i32_0 = arith.constant 0 : i32
    %c0_i32_1 = arith.constant 0 : i32
    %c0_i32_2 = arith.constant 0 : i32
    return %arg0, %c0_i32, %c0_i32_0, %c0_i32_1 : i32, i32, i32, i32
  }
  func.func @transform_1(%arg0: i32) -> (i32, i32) {
    %c0_i32 = arith.constant 0 : i32
    %c0_i32_0 = arith.constant 0 : i32
    %c0_i32_1 = arith.constant 0 : i32
    return %c0_i32, %c0_i32_0 : i32, i32
  }
  func.func @transform_2(%arg0: i32) -> (i32, i32) {
    %c0_i32 = arith.constant 0 : i32
    %c0_i32_0 = arith.constant 0 : i32
    %c0_i32_1 = arith.constant 0 : i32
    return %c0_i32, %c0_i32_0 : i32, i32
  }
  func.func @transform_3(%arg0: i32) -> (i32, i32) {
    %c0_i32 = arith.constant 0 : i32
    %c0_i32_0 = arith.constant 0 : i32
    %c0_i32_1 = arith.constant 0 : i32
    return %c0_i32, %c0_i32_0 : i32, i32
  }
  func.func @transform_4(%arg0: i32) -> (i32, i32) {
    %c0_i32 = arith.constant 0 : i32
    %c0_i32_0 = arith.constant 0 : i32
    %c0_i32_1 = arith.constant 0 : i32
    return %c0_i32, %c0_i32_0 : i32, i32
  }
  func.func @transform_5(%arg0: i32) -> (i32, i32) {
    %c0_i32 = arith.constant 0 : i32
    %c0_i32_0 = arith.constant 0 : i32
    %c0_i32_1 = arith.constant 0 : i32
    return %c0_i32, %c0_i32_0 : i32, i32
  }
  func.func @transform_6(%arg0: i32) -> (i32, i32) {
    %c0_i32 = arith.constant 0 : i32
    %c0_i32_0 = arith.constant 0 : i32
    %c0_i32_1 = arith.constant 0 : i32
    return %c0_i32, %c0_i32_0 : i32, i32
  }
  func.func @transform_7(%arg0: i32) -> (i32, i32) {
    %c0_i32 = arith.constant 0 : i32
    %c0_i32_0 = arith.constant 0 : i32
    %c0_i32_1 = arith.constant 0 : i32
    return %c0_i32, %c0_i32_0 : i32, i32
  }
  func.func @transform_8(%arg0: i32) -> (i32, i32) {
    %c0_i32 = arith.constant 0 : i32
    %c0_i32_0 = arith.constant 0 : i32
    %c0_i32_1 = arith.constant 0 : i32
    return %c0_i32, %c0_i32_0 : i32, i32
  }
  func.func @transform_9(%arg0: i32) -> (i32, i32) {
    %c0_i32 = arith.constant 0 : i32
    %c0_i32_0 = arith.constant 0 : i32
    %c0_i32_1 = arith.constant 0 : i32
    return %c0_i32, %c0_i32_0 : i32, i32
  }
  func.func @transform_10(%arg0: i32) -> (i32, i32) {
    %c0_i32 = arith.constant 0 : i32
    %c0_i32_0 = arith.constant 0 : i32
    %c0_i32_1 = arith.constant 0 : i32
    return %c0_i32, %c0_i32_0 : i32, i32
  }
  func.func @transform_11(%arg0: i32) -> (i32, i32) {
    %c0_i32 = arith.constant 0 : i32
    %c0_i32_0 = arith.constant 0 : i32
    %c0_i32_1 = arith.constant 0 : i32
    return %c0_i32, %c0_i32_0 : i32, i32
  }
  func.func @transform_12(%arg0: i32) -> (i32, i32) {
    %c0_i32 = arith.constant 0 : i32
    %c0_i32_0 = arith.constant 0 : i32
    %c0_i32_1 = arith.constant 0 : i32
    return %c0_i32, %c0_i32_0 : i32, i32
  }
  func.func @transform_13(%arg0: i32) -> (i32, i32) {
    %c0_i32 = arith.constant 0 : i32
    %c0_i32_0 = arith.constant 0 : i32
    %c0_i32_1 = arith.constant 0 : i32
    return %c0_i32, %c0_i32_0 : i32, i32
  }
  func.func @transform_14(%arg0: i32) -> (i32, i32) {
    %c0_i32 = arith.constant 0 : i32
    %c0_i32_0 = arith.constant 0 : i32
    %c0_i32_1 = arith.constant 0 : i32
    return %c0_i32, %c0_i32_0 : i32, i32
  }
  func.func @transform_15(%arg0: i32) -> (i32, i32) {
    %c0_i32 = arith.constant 0 : i32
    %c0_i32_0 = arith.constant 0 : i32
    %c0_i32_1 = arith.constant 0 : i32
    return %c0_i32, %c0_i32_0 : i32, i32
  }
  func.func @transform_16(%arg0: i32) -> (i32, i32) {
    %c0_i32 = arith.constant 0 : i32
    %c0_i32_0 = arith.constant 0 : i32
    %c0_i32_1 = arith.constant 0 : i32
    return %c0_i32, %c0_i32_0 : i32, i32
  }
  func.func @transform_17(%arg0: i32) -> (i32, i32) {
    %c0_i32 = arith.constant 0 : i32
    %c0_i32_0 = arith.constant 0 : i32
    %c0_i32_1 = arith.constant 0 : i32
    return %c0_i32, %c0_i32_0 : i32, i32
  }
  func.func @transform_18(%arg0: i32) -> (i32, i32) {
    %c0_i32 = arith.constant 0 : i32
    %c0_i32_0 = arith.constant 0 : i32
    %c0_i32_1 = arith.constant 0 : i32
    return %c0_i32, %c0_i32_0 : i32, i32
  }
  func.func @transform_19(%arg0: i32) -> (i32, i32, i32) {
    %c0_i32 = arith.constant 0 : i32
    %c0_i32_0 = arith.constant 0 : i32
    %c0_i32_1 = arith.constant 0 : i32
    return %arg0, %c0_i32, %c0_i32_0 : i32, i32, i32
  }
  func.func @transform_20(%arg0: i32) -> (i32, i32, i32) {
    %c0_i32 = arith.constant 0 : i32
    %c0_i32_0 = arith.constant 0 : i32
    %c0_i32_1 = arith.constant 0 : i32
    return %arg0, %c0_i32, %c0_i32_0 : i32, i32, i32
  }
}

</mosaic_0001>

<llo_original>
// kernel: byol_forward.2
$region0: #{byol_forward.2}
  #allocation0 [shape = 'u32[]', space=smem, size = 0x4, offset = 0x4, fixed_abs, tag = 'smem constant byte address 0x4 - core index']
  #allocation1 [shape = 'u32[144,128]{1,0:T(1,128)}', space=vmem, size = 0x12000, scoped, tag = 'internal scratch']
  %s0 = inlined_call_operand.vmem [shape: f32[8,32], index: 0, kind: input, shape index: {}]
  %s1 = inlined_call_operand.vmem [shape: f32[1,32], index: 1, kind: input, shape index: {}]
  %s2 = inlined_call_operand.vmem [shape: f32[1,32], index: 2, kind: input, shape index: {}]
  %s3 = inlined_call_operand.vmem [shape: f32[1,32], index: 3, kind: input, shape index: {}]
  %s4 = inlined_call_operand.vmem [shape: f32[32,128], index: 4, kind: input, shape index: {}]
  %s5 = inlined_call_operand.vmem [shape: f32[1,128], index: 5, kind: input, shape index: {}]
  %s6 = inlined_call_operand.vmem [shape: f32[8,32], index: 6, kind: input, shape index: {}, may-alias: {6,12}]
  %s7 = inlined_call_operand.vmem [shape: f32[1,32], index: 7, kind: input, shape index: {}, may-alias: {7,13}]
  %s8 = inlined_call_operand.vmem [shape: f32[1,32], index: 8, kind: input, shape index: {}, may-alias: {8,14}]
  %s9 = inlined_call_operand.vmem [shape: f32[1,32], index: 9, kind: input, shape index: {}, may-alias: {9,15}]
  %s10 = inlined_call_operand.vmem [shape: f32[32,128], index: 10, kind: input, shape index: {}, may-alias: {10,16}]
  %s11 = inlined_call_operand.vmem [shape: f32[1,128], index: 11, kind: input, shape index: {}, may-alias: {11,17}]
  %s12 = inlined_call_operand.vmem [shape: f32[8,32], index: 12, kind: output, shape index: {0}, may-alias: {6,12}]
  %s13 = inlined_call_operand.vmem [shape: f32[1,32], index: 13, kind: output, shape index: {1}, may-alias: {7,13}]
  %s14 = inlined_call_operand.vmem [shape: f32[1,32], index: 14, kind: output, shape index: {2}, may-alias: {8,14}]
  %s15 = inlined_call_operand.vmem [shape: f32[1,32], index: 15, kind: output, shape index: {3}, may-alias: {9,15}]
  %s16 = inlined_call_operand.vmem [shape: f32[32,128], index: 16, kind: output, shape index: {4}, may-alias: {10,16}]
  %s17 = inlined_call_operand.vmem [shape: f32[1,128], index: 17, kind: output, shape index: {5}, may-alias: {11,17}]
  %18 = xla_tuple %s12, %s13, %s14, %s15, %s16, %s17
  %s19 = sld [smem:[#allocation0]]
  $region98: #{byol_forward.2} parent=0
    _
  %s21 = ssub.s32 1, %s19
  %s22 = scalar_select 0, %s21, %s19
  // Predicated region
  $region2: #{byol_forward.2} parent=0 // pred_check
    _
  $region3: #{byol_forward.2} parent=0 // pred_check_branch
    %24 = sbr.rel (0) target = $region5
  $region4: #{byol_forward.2} parent=0 // pred_region
    _
  $region5: #{byol_forward.2} parent=0 // pred_fallthru
    _
  // Predicated region
  $region6: #{byol_forward.2} parent=0 // pred_check
    _
  $region7: #{byol_forward.2} parent=0 // pred_check_branch
    %26 = sbr.rel (0) target = $region9
  $region8: #{byol_forward.2} parent=0 // pred_region
    _
  $region9: #{byol_forward.2} parent=0 // pred_fallthru
    _
  // Predicated region
  $region10: #{byol_forward.2} parent=0 // pred_check
    _
  $region11: #{byol_forward.2} parent=0 // pred_check_branch
    %28 = sbr.rel (0) target = $region13
  $region12: #{byol_forward.2} parent=0 // pred_region
    _
  $region13: #{byol_forward.2} parent=0 // pred_fallthru
    _
  // Predicated region
  $region14: #{byol_forward.2} parent=0 // pred_check
    _
  $region15: #{byol_forward.2} parent=0 // pred_check_branch
    %30 = sbr.rel (0) target = $region17
  $region16: #{byol_forward.2} parent=0 // pred_region
    _
  $region17: #{byol_forward.2} parent=0 // pred_fallthru
    _
  // Predicated region
  $region18: #{byol_forward.2} parent=0 // pred_check
    _
  $region19: #{byol_forward.2} parent=0 // pred_check_branch
    %32 = sbr.rel (0) target = $region21
  $region20: #{byol_forward.2} parent=0 // pred_region
    _
  $region21: #{byol_forward.2} parent=0 // pred_fallthru
    _
  // Predicated region
  $region22: #{byol_forward.2} parent=0 // pred_check
    _
  $region23: #{byol_forward.2} parent=0 // pred_check_branch
    %34 = sbr.rel (0) target = $region25
  $region24: #{byol_forward.2} parent=0 // pred_region
    _
  $region25: #{byol_forward.2} parent=0 // pred_fallthru
    _
  // Predicated region
  $region26: #{byol_forward.2} parent=0 // pred_check
    _
  $region27: #{byol_forward.2} parent=0 // pred_check_branch
    %36 = sbr.rel (0) target = $region29
  $region28: #{byol_forward.2} parent=0 // pred_region
    _
  $region29: #{byol_forward.2} parent=0 // pred_fallthru
    _
  // Predicated region
  $region30: #{byol_forward.2} parent=0 // pred_check
    _
  $region31: #{byol_forward.2} parent=0 // pred_check_branch
    %38 = sbr.rel (0) target = $region33
  $region32: #{byol_forward.2} parent=0 // pred_region
    _
  $region33: #{byol_forward.2} parent=0 // pred_fallthru
    _
  // Predicated region
  $region34: #{byol_forward.2} parent=0 // pred_check
    _
  $region35: #{byol_forward.2} parent=0 // pred_check_branch
    %40 = sbr.rel (0) target = $region37
  $region36: #{byol_forward.2} parent=0 // pred_region
    _
  $region37: #{byol_forward.2} parent=0 // pred_fallthru
    _
  // Predicated region
  $region38: #{byol_forward.2} parent=0 // pred_check
    _
  $region39: #{byol_forward.2} parent=0 // pred_check_branch
    %42 = sbr.rel (0) target = $region41
  $region40: #{byol_forward.2} parent=0 // pred_region
    _
  $region41: #{byol_forward.2} parent=0 // pred_fallthru
    _
  // Predicated region
  $region42: #{byol_forward.2} parent=0 // pred_check
    _
  $region43: #{byol_forward.2} parent=0 // pred_check_branch
    %44 = sbr.rel (0) target = $region45
  $region44: #{byol_forward.2} parent=0 // pred_region
    _
  $region45: #{byol_forward.2} parent=0 // pred_fallthru
    _
  // Predicated region
  $region46: #{byol_forward.2} parent=0 // pred_check
    _
  $region47: #{byol_forward.2} parent=0 // pred_check_branch
    %46 = sbr.rel (0) target = $region49
  $region48: #{byol_forward.2} parent=0 // pred_region
    _
  $region49: #{byol_forward.2} parent=0 // pred_fallthru
    _
  %v47 = vld [vmem:[%s6] sm:$0xff]
  %v48 = vmul.f32 %v47, 0.996
  %v49 = vld [vmem:[%s0] sm:$0xff]
  %v50 = vmul.f32 %v49, 0.004
  %v51 = vadd.f32 %v48, %v50
  %vm52 = vcmask 261120
  %53 = vst.msk [vmem:[%s12] sm:$0xff] %vm52, %v51
  %v54 = vld [vmem:[%s7] sm:$0x1]
  %v55 = vmul.f32 %v54, 0.996
  %v56 = vld [vmem:[%s1] sm:$0x1]
  %v57 = vmul.f32 %v56, 0.004
  %v58 = vadd.f32 %v55, %v57
  %vm59 = vcmask 253952
  %60 = vst.msk [vmem:[%s13] sm:$0x1] %vm59, %v58
  %v61 = vld [vmem:[%s8] sm:$0x1]
  %v62 = vmul.f32 %v61, 0.996
  %v63 = vld [vmem:[%s2] sm:$0x1]
  %v64 = vmul.f32 %v63, 0.004
  %v65 = vadd.f32 %v62, %v64
  %66 = vst.msk [vmem:[%s14] sm:$0x1] %vm59, %v65
  %v67 = vld [vmem:[%s9] sm:$0x1]
  %v68 = vmul.f32 %v67, 0.996
  %v69 = vld [vmem:[%s3] sm:$0x1]
  %v70 = vmul.f32 %v69, 0.004
  %v71 = vadd.f32 %v68, %v70
  %72 = vst.msk [vmem:[%s15] sm:$0x1] %vm59, %v71
  %v73 = vld [vmem:[%s10] sm:$0xff]
  %v74 = vld [vmem:[%s10 + $0x8] sm:$0xff]
  %v75 = vld [vmem:[%s10 + $0x10] sm:$0xff]
  %v76 = vld [vmem:[%s10 + $0x18] sm:$0xff]
  %v77 = vmul.f32 %v73, 0.996
  %v78 = vmul.f32 %v74, 0.996
  %v79 = vmul.f32 %v75, 0.996
  %v80 = vmul.f32 %v76, 0.996
  %v81 = vld [vmem:[%s4] sm:$0xff]
  %v82 = vld [vmem:[%s4 + $0x8] sm:$0xff]
  %v83 = vld [vmem:[%s4 + $0x10] sm:$0xff]
  %v84 = vld [vmem:[%s4 + $0x18] sm:$0xff]
  %v85 = vmul.f32 %v81, 0.004
  %v86 = vmul.f32 %v82, 0.004
  %v87 = vmul.f32 %v83, 0.004
  %v88 = vmul.f32 %v84, 0.004
  %v89 = vadd.f32 %v77, %v85
  %v90 = vadd.f32 %v78, %v86
  %v91 = vadd.f32 %v79, %v87
  %v92 = vadd.f32 %v80, %v88
  %93 = vst [vmem:[%s16] sm:$0xff] %v89
  %94 = vst [vmem:[%s16 + $0x8] sm:$0xff] %v90
  %95 = vst [vmem:[%s16 + $0x10] sm:$0xff] %v91
  %96 = vst [vmem:[%s16 + $0x18] sm:$0xff] %v92
  %v97 = vld [vmem:[%s11] sm:$0x1]
  %v98 = vmul.f32 %v97, 0.996
  %v99 = vld [vmem:[%s5] sm:$0x1]
  %v100 = vmul.f32 %v99, 0.004
  %v101 = vadd.f32 %v98, %v100
  %102 = vst [vmem:[%s17] sm:$0x1] %v101
  // Predicated region
  $region50: #{byol_forward.2} parent=0 // pred_check
    _
  $region51: #{byol_forward.2} parent=0 // pred_check_branch
    %104 = sbr.rel (0) target = $region53
  $region52: #{byol_forward.2} parent=0 // pred_region
    _
  $region53: #{byol_forward.2} parent=0 // pred_fallthru
    _
  // Predicated region
  $region54: #{byol_forward.2} parent=0 // pred_check
    _
  $region55: #{byol_forward.2} parent=0 // pred_check_branch
    %106 = sbr.rel (0) target = $region57
  $region56: #{byol_forward.2} parent=0 // pred_region
    _
  $region57: #{byol_forward.2} parent=0 // pred_fallthru
    _
  // Predicated region
  $region58: #{byol_forward.2} parent=0 // pred_check
    _
  $region59: #{byol_forward.2} parent=0 // pred_check_branch
    %108 = sbr.rel (0) target = $region61
  $region60: #{byol_forward.2} parent=0 // pred_region
    _
  $region61: #{byol_forward.2} parent=0 // pred_fallthru
    _
  // Predicated region
  $region62: #{byol_forward.2} parent=0 // pred_check
    _
  $region63: #{byol_forward.2} parent=0 // pred_check_branch
    %110 = sbr.rel (0) target = $region65
  $region64: #{byol_forward.2} parent=0 // pred_region
    _
  $region65: #{byol_forward.2} parent=0 // pred_fallthru
    _
  // Predicated region
  $region66: #{byol_forward.2} parent=0 // pred_check
    _
  $region67: #{byol_forward.2} parent=0 // pred_check_branch
    %112 = sbr.rel (0) target = $region69
  $region68: #{byol_forward.2} parent=0 // pred_region
    _
  $region69: #{byol_forward.2} parent=0 // pred_fallthru
    _
  // Predicated region
  $region70: #{byol_forward.2} parent=0 // pred_check
    _
  $region71: #{byol_forward.2} parent=0 // pred_check_branch
    %114 = sbr.rel (0) target = $region73
  $region72: #{byol_forward.2} parent=0 // pred_region
    _
  $region73: #{byol_forward.2} parent=0 // pred_fallthru
    _
  // Predicated region
  $region74: #{byol_forward.2} parent=0 // pred_check
    _
  $region75: #{byol_forward.2} parent=0 // pred_check_branch
    %116 = sbr.rel (0) target = $region77
  $region76: #{byol_forward.2} parent=0 // pred_region
    _
  $region77: #{byol_forward.2} parent=0 // pred_fallthru
    _
  // Predicated region
  $region78: #{byol_forward.2} parent=0 // pred_check
    _
  $region79: #{byol_forward.2} parent=0 // pred_check_branch
    %118 = sbr.rel (0) target = $region81
  $region80: #{byol_forward.2} parent=0 // pred_region
    _
  $region81: #{byol_forward.2} parent=0 // pred_fallthru
    _
  // Predicated region
  $region82: #{byol_forward.2} parent=0 // pred_check
    _
  $region83: #{byol_forward.2} parent=0 // pred_check_branch
    %120 = sbr.rel (0) target = $region85
  $region84: #{byol_forward.2} parent=0 // pred_region
    _
  $region85: #{byol_forward.2} parent=0 // pred_fallthru
    _
  // Predicated region
  $region86: #{byol_forward.2} parent=0 // pred_check
    _
  $region87: #{byol_forward.2} parent=0 // pred_check_branch
    %122 = sbr.rel (0) target = $region89
  $region88: #{byol_forward.2} parent=0 // pred_region
    _
  $region89: #{byol_forward.2} parent=0 // pred_fallthru
    _
  // Predicated region
  $region90: #{byol_forward.2} parent=0 // pred_check
    _
  $region91: #{byol_forward.2} parent=0 // pred_check_branch
    %124 = sbr.rel (0) target = $region93
  $region92: #{byol_forward.2} parent=0 // pred_region
    _
  $region93: #{byol_forward.2} parent=0 // pred_fallthru
    _
  // Predicated region
  $region94: #{byol_forward.2} parent=0 // pred_check
    _
  $region95: #{byol_forward.2} parent=0 // pred_check_branch
    %126 = sbr.rel (0) target = $region97
  $region96: #{byol_forward.2} parent=0 // pred_region
    _
  $region97: #{byol_forward.2} parent=0 // pred_fallthru
    _

// kernel: byol_forward.3
$region0: #{byol_forward.3}
  #allocation0 [shape = 'u32[]', space=smem, size = 0x4, offset = 0x4, fixed_abs, tag = 'smem constant byte address 0x4 - core index']
  #allocation1 [shape = 'u32[144,128]{1,0:T(1,128)}', space=vmem, size = 0x12000, scoped, tag = 'internal scratch']
  %s0 = inlined_call_operand.vmem [shape: f32[2,4,8,256], index: 0, kind: input, shape index: {}]
  %s1 = inlined_call_operand.vmem [shape: f32[8,32], index: 1, kind: input, shape index: {}]
  %s2 = inlined_call_operand.vmem [shape: f32[1,32], index: 2, kind: input, shape index: {}]
  %s3 = inlined_call_operand.vmem [shape: f32[1,32], index: 3, kind: input, shape index: {}]
  %s4 = inlined_call_operand.vmem [shape: f32[1,32], index: 4, kind: input, shape index: {}]
  %s5 = inlined_call_operand.vmem [shape: f32[32,128], index: 5, kind: input, shape index: {}]
  %s6 = inlined_call_operand.vmem [shape: f32[1,128], index: 6, kind: input, shape index: {}]
  %s7 = inlined_call_operand.vmem [shape: f32[8,32], index: 7, kind: input, shape index: {}]
  %s8 = inlined_call_operand.vmem [shape: f32[1,32], index: 8, kind: input, shape index: {}]
  %s9 = inlined_call_operand.vmem [shape: f32[1,32], index: 9, kind: input, shape index: {}]
  %s10 = inlined_call_operand.vmem [shape: f32[1,32], index: 10, kind: input, shape index: {}]
  %s11 = inlined_call_operand.vmem [shape: f32[32,128], index: 11, kind: input, shape index: {}]
  %s12 = inlined_call_operand.vmem [shape: f32[1,128], index: 12, kind: input, shape index: {}]
  %s13 = inlined_call_operand.vmem [shape: f32[128,32], index: 13, kind: input, shape index: {}]
  %s14 = inlined_call_operand.vmem [shape: f32[1,32], index: 14, kind: input, shape index: {}]
  %s15 = inlined_call_operand.vmem [shape: f32[1,32], index: 15, kind: input, shape index: {}]
  %s16 = inlined_call_operand.vmem [shape: f32[1,32], index: 16, kind: input, shape index: {}]
  %s17 = inlined_call_operand.vmem [shape: f32[32,128], index: 17, kind: input, shape index: {}]
  %s18 = inlined_call_operand.vmem [shape: f32[1,128], index: 18, kind: input, shape index: {}]
  %s19 = inlined_call_operand.vmem [shape: f32[2,4,128], index: 19, kind: output, shape index: {0}]
  %s20 = inlined_call_operand.vmem [shape: f32[2,4,128], index: 20, kind: output, shape index: {1}]
  %21 = xla_tuple %s19, %s20
  %s22 = sld [smem:[#allocation0]]
  $region117: #{byol_forward.3} parent=0
    _
  %s24 = ssub.s32 1, %s22
  %s25 = scalar_select 0, %s24, %s22
  loop: start=0, step=1, limit=4
  $region2: #{byol_forward.3} parent=0 // loop_pre_header
    _
  $region3: #{byol_forward.3} parent=0 // loop_header
    %s27 = sphi 0, %s31
    %p28 = scmp.ge.s32.totalorder %s27, 4
    %s37 = sphi 0, %s39
    %s40 = sphi 0, %s37
    %s41 = sphi 0, %s40
    %s57 = sphi 0, %s41
    %s61 = sphi 0, %s61
    %s63 = sphi 0, %s61
    %s64 = sphi 0, %s63
    %s78 = sphi 0, %s64
    %s82 = sphi 0, %s82
    %s84 = sphi 0, %s82
    %s85 = sphi 0, %s84
    %s99 = sphi 0, %s85
    %s103 = sphi 0, %s103
    %s105 = sphi 0, %s103
    %s106 = sphi 0, %s105
    %s120 = sphi 0, %s106
    %s124 = sphi 0, %s124
    %s126 = sphi 0, %s124
    %s127 = sphi 0, %s126
    %s141 = sphi 0, %s127
    %s145 = sphi 0, %s145
    %s147 = sphi 0, %s145
    %s148 = sphi 0, %s147
    %s162 = sphi 0, %s148
    %s166 = sphi 0, %s166
    %s168 = sphi 0, %s166
    %s169 = sphi 0, %s168
    %s183 = sphi 0, %s169
    %s187 = sphi 0, %s187
    %s189 = sphi 0, %s187
    %s190 = sphi 0, %s189
    %s204 = sphi 0, %s190
    %s208 = sphi 0, %s208
    %s210 = sphi 0, %s208
    %s211 = sphi 0, %s210
    %s225 = sphi 0, %s211
    %s229 = sphi 0, %s229
    %s231 = sphi 0, %s229
    %s232 = sphi 0, %s231
    %s246 = sphi 0, %s232
    %s250 = sphi 0, %s250
    %s252 = sphi 0, %s250
    %s253 = sphi 0, %s252
    %s267 = sphi 0, %s253
    %s271 = sphi 0, %s271
    %s273 = sphi 0, %s271
    %s274 = sphi 0, %s273
    %s288 = sphi 0, %s274
    %s292 = sphi 0, %s292
    %s294 = sphi 0, %s292
    %s295 = sphi 0, %s294
    %s309 = sphi 0, %s295
    %s313 = sphi 0, %s313
    %s315 = sphi 0, %s313
    %s316 = sphi 0, %s315
    %s330 = sphi 0, %s316
    %s334 = sphi 0, %s334
    %s336 = sphi 0, %s334
    %s337 = sphi 0, %s336
    %s351 = sphi 0, %s337
    %s355 = sphi 0, %s355
    %s357 = sphi 0, %s355
    %s358 = sphi 0, %s357
    %s372 = sphi 0, %s358
    %s376 = sphi 0, %s376
    %s378 = sphi 0, %s376
    %s379 = sphi 0, %s378
    %s393 = sphi 0, %s379
    %s397 = sphi 0, %s397
    %s399 = sphi 0, %s397
    %s400 = sphi 0, %s399
    %s414 = sphi 0, %s400
    %s418 = sphi 0, %s418
    %s420 = sphi 0, %s418
    %s421 = sphi 0, %s420
    %s435 = sphi 0, %s421
    %s441 = sphi 0, %s443
    %s444 = sphi 0, %s441
    %s445 = sphi 0, %s444
    %s461 = sphi 0, %s445
    %s467 = sphi 0, %s469
    %s470 = sphi 0, %s467
    %s471 = sphi 0, %s470
    %s487 = sphi 0, %s471
  $region4: #{byol_forward.3} parent=0 // loop_header_branch
    %30 = sbr.rel (%p28) target = $region8
  $region5: #{byol_forward.3} parent=0 // loop_body
    %s32 = ssub.s32 %s27, 1
    %s33 = ssub.s32 %s27, 2
    %s34 = sadd.s32 %s27, 1
    %s35 = ssub.s32 %s27, %s34
    %p36 = scmp.eq.s32.totalorder %s35, 0
    %s38 = sadd.s32 %s37, 1
    %s39 = scalar_select %p36, %s37, %s38
    %p42 = pneg %p36
    %p43 = scmp.eq.s32.totalorder %s27, 1
    %p44 = por %p42, %p43
    %p45 = scmp.ne.s32.totalorder %s37, %s40
    %p46 = scmp.eq.s32.totalorder %s27, 0
    %p47 = por %p45, %p46
    %p48 = scmp.ne.s32.totalorder %s37, %s40
    %p49 = scmp.eq.s32.totalorder %s32, 1
    %p50 = por %p48, %p49
    %p51 = scmp.ne.s32.totalorder %s40, %s41
    %p52 = scmp.eq.s32.totalorder %s32, 0
    %p53 = por %p51, %p52
    %p54 = scmp.ne.s32.totalorder %s40, %s41
    %p55 = scmp.eq.s32.totalorder %s33, 1
    %p56 = por %p54, %p55
    %p58 = scmp.ne.s32.totalorder %s41, %s57
    %p59 = scmp.eq.s32.totalorder %s33, 0
    %p60 = por %p58, %p59
    %s62 = sadd.s32 %s61, 1
    %p65 = scmp.eq.s32.totalorder %s27, 1
    %p66 = scmp.ne.s32.totalorder %s61, %s63
    %p67 = scmp.eq.s32.totalorder %s27, 0
    %p68 = por %p66, %p67
    %p69 = scmp.ne.s32.totalorder %s61, %s63
    %p70 = scmp.eq.s32.totalorder %s32, 1
    %p71 = por %p69, %p70
    %p72 = scmp.ne.s32.totalorder %s63, %s64
    %p73 = scmp.eq.s32.totalorder %s32, 0
    %p74 = por %p72, %p73
    %p75 = scmp.ne.s32.totalorder %s63, %s64
    %p76 = scmp.eq.s32.totalorder %s33, 1
    %p77 = por %p75, %p76
    %p79 = scmp.ne.s32.totalorder %s64, %s78
    %p80 = scmp.eq.s32.totalorder %s33, 0
    %p81 = por %p79, %p80
    %s83 = sadd.s32 %s82, 1
    %p86 = scmp.eq.s32.totalorder %s27, 1
    %p87 = scmp.ne.s32.totalorder %s82, %s84
    %p88 = scmp.eq.s32.totalorder %s27, 0
    %p89 = por %p87, %p88
    %p90 = scmp.ne.s32.totalorder %s82, %s84
    %p91 = scmp.eq.s32.totalorder %s32, 1
    %p92 = por %p90, %p91
    %p93 = scmp.ne.s32.totalorder %s84, %s85
    %p94 = scmp.eq.s32.totalorder %s32, 0
    %p95 = por %p93, %p94
    %p96 = scmp.ne.s32.totalorder %s84, %s85
    %p97 = scmp.eq.s32.totalorder %s33, 1
    %p98 = por %p96, %p97
    %p100 = scmp.ne.s32.totalorder %s85, %s99
    %p101 = scmp.eq.s32.totalorder %s33, 0
    %p102 = por %p100, %p101
    %s104 = sadd.s32 %s103, 1
    %p107 = scmp.eq.s32.totalorder %s27, 1
    %p108 = scmp.ne.s32.totalorder %s103, %s105
    %p109 = scmp.eq.s32.totalorder %s27, 0
    %p110 = por %p108, %p109
    %p111 = scmp.ne.s32.totalorder %s103, %s105
    %p112 = scmp.eq.s32.totalorder %s32, 1
    %p113 = por %p111, %p112
    %p114 = scmp.ne.s32.totalorder %s105, %s106
    %p115 = scmp.eq.s32.totalorder %s32, 0
    %p116 = por %p114, %p115
    %p117 = scmp.ne.s32.totalorder %s105, %s106
    %p118 = scmp.eq.s32.totalorder %s33, 1
    %p119 = por %p117, %p118
    %p121 = scmp.ne.s32.totalorder %s106, %s120
    %p122 = scmp.eq.s32.totalorder %s33, 0
    %p123 = por %p121, %p122
    %s125 = sadd.s32 %s124, 1
    %p128 = scmp.eq.s32.totalorder %s27, 1
    %p129 = scmp.ne.s32.totalorder %s124, %s126
    %p130 = scmp.eq.s32.totalorder %s27, 0
    %p131 = por %p129, %p130
    %p132 = scmp.ne.s32.totalorder %s124, %s126
    %p133 = scmp.eq.s32.totalorder %s32, 1
    %p134 = por %p132, %p133
    %p135 = scmp.ne.s32.totalorder %s126, %s127
    %p136 = scmp.eq.s32.totalorder %s32, 0
    %p137 = por %p135, %p136
    %p138 = scmp.ne.s32.totalorder %s126, %s127
    %p139 = scmp.eq.s32.totalorder %s33, 1
    %p140 = por %p138, %p139
    %p142 = scmp.ne.s32.totalorder %s127, %s141
    %p143 = scmp.eq.s32.totalorder %s33, 0
    %p144 = por %p142, %p143
    %s146 = sadd.s32 %s145, 1
    %p149 = scmp.eq.s32.totalorder %s27, 1
    %p150 = scmp.ne.s32.totalorder %s145, %s147
    %p151 = scmp.eq.s32.totalorder %s27, 0
    %p152 = por %p150, %p151
    %p153 = scmp.ne.s32.totalorder %s145, %s147
    %p154 = scmp.eq.s32.totalorder %s32, 1
    %p155 = por %p153, %p154
    %p156 = scmp.ne.s32.totalorder %s147, %s148
    %p157 = scmp.eq.s32.totalorder %s32, 0
    %p158 = por %p156, %p157
    %p159 = scmp.ne.s32.totalorder %s147, %s148
    %p160 = scmp.eq.s32.totalorder %s33, 1
    %p161 = por %p159, %p160
    %p163 = scmp.ne.s32.totalorder %s148, %s162
    %p164 = scmp.eq.s32.totalorder %s33, 0
    %p165 = por %p163, %p164
    %s167 = sadd.s32 %s166, 1
    %p170 = scmp.eq.s32.totalorder %s27, 1
    %p171 = scmp.ne.s32.totalorder %s166, %s168
    %p172 = scmp.eq.s32.totalorder %s27, 0
    %p173 = por %p171, %p172
    %p174 = scmp.ne.s32.totalorder %s166, %s168
    %p175 = scmp.eq.s32.totalorder %s32, 1
    %p176 = por %p174, %p175
    %p177 = scmp.ne.s32.totalorder %s168, %s169
    %p178 = scmp.eq.s32.totalorder %s32, 0
    %p179 = por %p177, %p178
    %p180 = scmp.ne.s32.totalorder %s168, %s169
    %p181 = scmp.eq.s32.totalorder %s33, 1
    %p182 = por %p180, %p181
    %p184 = scmp.ne.s32.totalorder %s169, %s183
    %p185 = scmp.eq.s32.totalorder %s33, 0
    %p186 = por %p184, %p185
    %s188 = sadd.s32 %s187, 1
    %p191 = scmp.eq.s32.totalorder %s27, 1
    %p192 = scmp.ne.s32.totalorder %s187, %s189
    %p193 = scmp.eq.s32.totalorder %s27, 0
    %p194 = por %p192, %p193
    %p195 = scmp.ne.s32.totalorder %s187, %s189
    %p196 = scmp.eq.s32.totalorder %s32, 1
    %p197 = por %p195, %p196
    %p198 = scmp.ne.s32.totalorder %s189, %s190
    %p199 = scmp.eq.s32.totalorder %s32, 0
    %p200 = por %p198, %p199
    %p201 = scmp.ne.s32.totalorder %s189, %s190
    %p202 = scmp.eq.s32.totalorder %s33, 1
    %p203 = por %p201, %p202
    %p205 = scmp.ne.s32.totalorder %s190, %s204
    %p206 = scmp.eq.s32.totalorder %s33, 0
    %p207 = por %p205, %p206
    %s209 = sadd.s32 %s208, 1
    %p212 = scmp.eq.s32.totalorder %s27, 1
    %p213 = scmp.ne.s32.totalorder %s208, %s210
    %p214 = scmp.eq.s32.totalorder %s27, 0
    %p215 = por %p213, %p214
    %p216 = scmp.ne.s32.totalorder %s208, %s210
    %p217 = scmp.eq.s32.totalorder %s32, 1
    %p218 = por %p216, %p217
    %p219 = scmp.ne.s32.totalorder %s210, %s211
    %p220 = scmp.eq.s32.totalorder %s32, 0
    %p221 = por %p219, %p220
    %p222 = scmp.ne.s32.totalorder %s210, %s211
    %p223 = scmp.eq.s32.totalorder %s33, 1
    %p224 = por %p222, %p223
    %p226 = scmp.ne.s32.totalorder %s211, %s225
    %p227 = scmp.eq.s32.totalorder %s33, 0
    %p228 = por %p226, %p227
    %s230 = sadd.s32 %s229, 1
    %p233 = scmp.eq.s32.totalorder %s27, 1
    %p234 = scmp.ne.s32.totalorder %s229, %s231
    %p235 = scmp.eq.s32.totalorder %s27, 0
    %p236 = por %p234, %p235
    %p237 = scmp.ne.s32.totalorder %s229, %s231
    %p238 = scmp.eq.s32.totalorder %s32, 1
    %p239 = por %p237, %p238
    %p240 = scmp.ne.s32.totalorder %s231, %s232
    %p241 = scmp.eq.s32.totalorder %s32, 0
    %p242 = por %p240, %p241
    %p243 = scmp.ne.s32.totalorder %s231, %s232
    %p244 = scmp.eq.s32.totalorder %s33, 1
    %p245 = por %p243, %p244
    %p247 = scmp.ne.s32.totalorder %s232, %s246
    %p248 = scmp.eq.s32.totalorder %s33, 0
    %p249 = por %p247, %p248
    %s251 = sadd.s32 %s250, 1
    %p254 = scmp.eq.s32.totalorder %s27, 1
    %p255 = scmp.ne.s32.totalorder %s250, %s252
    %p256 = scmp.eq.s32.totalorder %s27, 0
    %p257 = por %p255, %p256
    %p258 = scmp.ne.s32.totalorder %s250, %s252
    %p259 = scmp.eq.s32.totalorder %s32, 1
    %p260 = por %p258, %p259
    %p261 = scmp.ne.s32.totalorder %s252, %s253
    %p262 = scmp.eq.s32.totalorder %s32, 0
    %p263 = por %p261, %p262
    %p264 = scmp.ne.s32.totalorder %s252, %s253
    %p265 = scmp.eq.s32.totalorder %s33, 1
    %p266 = por %p264, %p265
    %p268 = scmp.ne.s32.totalorder %s253, %s267
    %p269 = scmp.eq.s32.totalorder %s33, 0
    %p270 = por %p268, %p269
    %s272 = sadd.s32 %s271, 1
    %p275 = scmp.eq.s32.totalorder %s27, 1
    %p276 = scmp.ne.s32.totalorder %s271, %s273
    %p277 = scmp.eq.s32.totalorder %s27, 0
    %p278 = por %p276, %p277
    %p279 = scmp.ne.s32.totalorder %s271, %s273
    %p280 = scmp.eq.s32.totalorder %s32, 1
    %p281 = por %p279, %p280
    %p282 = scmp.ne.s32.totalorder %s273, %s274
    %p283 = scmp.eq.s32.totalorder %s32, 0
    %p284 = por %p282, %p283
    %p285 = scmp.ne.s32.totalorder %s273, %s274
    %p286 = scmp.eq.s32.totalorder %s33, 1
    %p287 = por %p285, %p286
    %p289 = scmp.ne.s32.totalorder %s274, %s288
    %p290 = scmp.eq.s32.totalorder %s33, 0
    %p291 = por %p289, %p290
    %s293 = sadd.s32 %s292, 1
    %p296 = scmp.eq.s32.totalorder %s27, 1
    %p297 = scmp.ne.s32.totalorder %s292, %s294
    %p298 = scmp.eq.s32.totalorder %s27, 0
    %p299 = por %p297, %p298
    %p300 = scmp.ne.s32.totalorder %s292, %s294
    %p301 = scmp.eq.s32.totalorder %s32, 1
    %p302 = por %p300, %p301
    %p303 = scmp.ne.s32.totalorder %s294, %s295
    %p304 = scmp.eq.s32.totalorder %s32, 0
    %p305 = por %p303, %p304
    %p306 = scmp.ne.s32.totalorder %s294, %s295
    %p307 = scmp.eq.s32.totalorder %s33, 1
    %p308 = por %p306, %p307
    %p310 = scmp.ne.s32.totalorder %s295, %s309
    %p311 = scmp.eq.s32.totalorder %s33, 0
    %p312 = por %p310, %p311
    %s314 = sadd.s32 %s313, 1
    %p317 = scmp.eq.s32.totalorder %s27, 1
    %p318 = scmp.ne.s32.totalorder %s313, %s315
    %p319 = scmp.eq.s32.totalorder %s27, 0
    %p320 = por %p318, %p319
    %p321 = scmp.ne.s32.totalorder %s313, %s315
    %p322 = scmp.eq.s32.totalorder %s32, 1
    %p323 = por %p321, %p322
    %p324 = scmp.ne.s32.totalorder %s315, %s316
    %p325 = scmp.eq.s32.totalorder %s32, 0
    %p326 = por %p324, %p325
    %p327 = scmp.ne.s32.totalorder %s315, %s316
    %p328 = scmp.eq.s32.totalorder %s33, 1
    %p329 = por %p327, %p328
    %p331 = scmp.ne.s32.totalorder %s316, %s330
    %p332 = scmp.eq.s32.totalorder %s33, 0
    %p333 = por %p331, %p332
    %s335 = sadd.s32 %s334, 1
    %p338 = scmp.eq.s32.totalorder %s27, 1
    %p339 = scmp.ne.s32.totalorder %s334, %s336
    %p340 = scmp.eq.s32.totalorder %s27, 0
    %p341 = por %p339, %p340
    %p342 = scmp.ne.s32.totalorder %s334, %s336
    %p343 = scmp.eq.s32.totalorder %s32, 1
    %p344 = por %p342, %p343
    %p345 = scmp.ne.s32.totalorder %s336, %s337
    %p346 = scmp.eq.s32.totalorder %s32, 0
    %p347 = por %p345, %p346
    %p348 = scmp.ne.s32.totalorder %s336, %s337
    %p349 = scmp.eq.s32.totalorder %s33, 1
    %p350 = por %p348, %p349
    %p352 = scmp.ne.s32.totalorder %s337, %s351
    %p353 = scmp.eq.s32.totalorder %s33, 0
    %p354 = por %p352, %p353
    %s356 = sadd.s32 %s355, 1
    %p359 = scmp.eq.s32.totalorder %s27, 1
    %p360 = scmp.ne.s32.totalorder %s355, %s357
    %p361 = scmp.eq.s32.totalorder %s27, 0
    %p362 = por %p360, %p361
    %p363 = scmp.ne.s32.totalorder %s355, %s357
    %p364 = scmp.eq.s32.totalorder %s32, 1
    %p365 = por %p363, %p364
    %p366 = scmp.ne.s32.totalorder %s357, %s358
    %p367 = scmp.eq.s32.totalorder %s32, 0
    %p368 = por %p366, %p367
    %p369 = scmp.ne.s32.totalorder %s357, %s358
    %p370 = scmp.eq.s32.totalorder %s33, 1
    %p371 = por %p369, %p370
    %p373 = scmp.ne.s32.totalorder %s358, %s372
    %p374 = scmp.eq.s32.totalorder %s33, 0
    %p375 = por %p373, %p374
    %s377 = sadd.s32 %s376, 1
    %p380 = scmp.eq.s32.totalorder %s27, 1
    %p381 = scmp.ne.s32.totalorder %s376, %s378
    %p382 = scmp.eq.s32.totalorder %s27, 0
    %p383 = por %p381, %p382
    %p384 = scmp.ne.s32.totalorder %s376, %s378
    %p385 = scmp.eq.s32.totalorder %s32, 1
    %p386 = por %p384, %p385
    %p387 = scmp.ne.s32.totalorder %s378, %s379
    %p388 = scmp.eq.s32.totalorder %s32, 0
    %p389 = por %p387, %p388
    %p390 = scmp.ne.s32.totalorder %s378, %s379
    %p391 = scmp.eq.s32.totalorder %s33, 1
    %p392 = por %p390, %p391
    %p394 = scmp.ne.s32.totalorder %s379, %s393
    %p395 = scmp.eq.s32.totalorder %s33, 0
    %p396 = por %p394, %p395
    %s398 = sadd.s32 %s397, 1
    %p401 = scmp.eq.s32.totalorder %s27, 1
    %p402 = scmp.ne.s32.totalorder %s397, %s399
    %p403 = scmp.eq.s32.totalorder %s27, 0
    %p404 = por %p402, %p403
    %p405 = scmp.ne.s32.totalorder %s397, %s399
    %p406 = scmp.eq.s32.totalorder %s32, 1
    %p407 = por %p405, %p406
    %p408 = scmp.ne.s32.totalorder %s399, %s400
    %p409 = scmp.eq.s32.totalorder %s32, 0
    %p410 = por %p408, %p409
    %p411 = scmp.ne.s32.totalorder %s399, %s400
    %p412 = scmp.eq.s32.totalorder %s33, 1
    %p413 = por %p411, %p412
    %p415 = scmp.ne.s32.totalorder %s400, %s414
    %p416 = scmp.eq.s32.totalorder %s33, 0
    %p417 = por %p415, %p416
    %s419 = sadd.s32 %s418, 1
    %p422 = scmp.eq.s32.totalorder %s27, 1
    %p423 = scmp.ne.s32.totalorder %s418, %s420
    %p424 = scmp.eq.s32.totalorder %s27, 0
    %p425 = por %p423, %p424
    %p426 = scmp.ne.s32.totalorder %s418, %s420
    %p427 = scmp.eq.s32.totalorder %s32, 1
    %p428 = por %p426, %p427
    %p429 = scmp.ne.s32.totalorder %s420, %s421
    %p430 = scmp.eq.s32.totalorder %s32, 0
    %p431 = por %p429, %p430
    %p432 = scmp.ne.s32.totalorder %s420, %s421
    %p433 = scmp.eq.s32.totalorder %s33, 1
    %p434 = por %p432, %p433
    %p436 = scmp.ne.s32.totalorder %s421, %s435
    %p437 = scmp.eq.s32.totalorder %s33, 0
    %p438 = por %p436, %p437
    %s439 = ssub.s32 %s27, %s34
    %p440 = scmp.eq.s32.totalorder %s439, 0
    %s442 = sadd.s32 %s441, 1
    %s443 = scalar_select %p440, %s441, %s442
    %p446 = pneg %p440
    %p447 = scmp.eq.s32.totalorder %s27, 1
    %p448 = por %p446, %p447
    %p449 = scmp.ne.s32.totalorder %s441, %s444
    %p450 = scmp.eq.s32.totalorder %s27, 0
    %p451 = por %p449, %p450
    %p452 = scmp.ne.s32.totalorder %s441, %s444
    %p453 = scmp.eq.s32.totalorder %s32, 1
    %p454 = por %p452, %p453
    %p455 = scmp.ne.s32.totalorder %s444, %s445
    %p456 = scmp.eq.s32.totalorder %s32, 0
    %p457 = por %p455, %p456
    %p458 = scmp.ne.s32.totalorder %s444, %s445
    %p459 = scmp.eq.s32.totalorder %s33, 1
    %p460 = por %p458, %p459
    %p462 = scmp.ne.s32.totalorder %s445, %s461
    %p463 = scmp.eq.s32.totalorder %s33, 0
    %p464 = por %p462, %p463
    %s465 = ssub.s32 %s27, %s34
    %p466 = scmp.eq.s32.totalorder %s465, 0
    %s468 = sadd.s32 %s467, 1
    %s469 = scalar_select %p466, %s467, %s468
    %p472 = pneg %p466
    %p473 = scmp.eq.s32.totalorder %s27, 1
    %p474 = por %p472, %p473
    %p475 = scmp.ne.s32.totalorder %s467, %s470
    %p476 = scmp.eq.s32.totalorder %s27, 0
    %p477 = por %p475, %p476
    %p478 = scmp.ne.s32.totalorder %s467, %s470
    %p479 = scmp.eq.s32.totalorder %s32, 1
    %p480 = por %p478, %p479
    %p481 = scmp.ne.s32.totalorder %s470, %s471
    %p482 = scmp.eq.s32.totalorder %s32, 0
    %p483 = por %p481, %p482
    %p484 = scmp.ne.s32.totalorder %s470, %s471
    %p485 = scmp.eq.s32.totalorder %s33, 1
    %p486 = por %p484, %p485
    %p488 = scmp.ne.s32.totalorder %s471, %s487
    %p489 = scmp.eq.s32.totalorder %s33, 0
    %p490 = por %p488, %p489
    %p491 = scmp.le.s32.totalorder 1, %s27
    %p492 = scmp.lt.s32.totalorder %s27, 3
    %p493 = pnand %p491, %p492
    %p494 = pneg %p493
    // Predicated region
    $region9: #{byol_forward.3} parent=5 // pred_check
      _
    $region10: #{byol_forward.3} parent=5 // pred_check_branch
      %496 = sbr.rel (%p493) target = $region12
    $region11: #{byol_forward.3} parent=5 // pred_region
      %s497 = ssub.s32 %s27, 1
      // Predicated region
      $region13: #{byol_forward.3} parent=11 // pred_check
        %p498 = pneg %p74
      $region14: #{byol_forward.3} parent=11 // pred_check_branch
        %500 = sbr.rel (%p498) target = $region16
      $region15: #{byol_forward.3} parent=11 // pred_region
        _
      $region16: #{byol_forward.3} parent=11 // pred_fallthru
        _
      // Predicated region
      $region17: #{byol_forward.3} parent=11 // pred_check
        %p501 = pneg %p95
      $region18: #{byol_forward.3} parent=11 // pred_check_branch
        %503 = sbr.rel (%p501) target = $region20
      $region19: #{byol_forward.3} parent=11 // pred_region
        _
      $region20: #{byol_forward.3} parent=11 // pred_fallthru
        _
      // Predicated region
      $region21: #{byol_forward.3} parent=11 // pred_check
        %p504 = pneg %p116
      $region22: #{byol_forward.3} parent=11 // pred_check_branch
        %506 = sbr.rel (%p504) target = $region24
      $region23: #{byol_forward.3} parent=11 // pred_region
        _
      $region24: #{byol_forward.3} parent=11 // pred_fallthru
        _
      // Predicated region
      $region25: #{byol_forward.3} parent=11 // pred_check
        %p507 = pneg %p137
      $region26: #{byol_forward.3} parent=11 // pred_check_branch
        %509 = sbr.rel (%p507) target = $region28
      $region27: #{byol_forward.3} parent=11 // pred_region
        _
      $region28: #{byol_forward.3} parent=11 // pred_fallthru
        _
      // Predicated region
      $region29: #{byol_forward.3} parent=11 // pred_check
        %p510 = pneg %p158
      $region30: #{byol_forward.3} parent=11 // pred_check_branch
        %512 = sbr.rel (%p510) target = $region32
      $region31: #{byol_forward.3} parent=11 // pred_region
        _
      $region32: #{byol_forward.3} parent=11 // pred_fallthru
        _
      // Predicated region
      $region33: #{byol_forward.3} parent=11 // pred_check
        %p513 = pneg %p179
      $region34: #{byol_forward.3} parent=11 // pred_check_branch
        %515 = sbr.rel (%p513) target = $region36
      $region35: #{byol_forward.3} parent=11 // pred_region
        _
      $region36: #{byol_forward.3} parent=11 // pred_fallthru
        _
      // Predicated region
      $region37: #{byol_forward.3} parent=11 // pred_check
        %p516 = pneg %p200
      $region38: #{byol_forward.3} parent=11 // pred_check_branch
        %518 = sbr.rel (%p516) target = $region40
      $region39: #{byol_forward.3} parent=11 // pred_region
        _
      $region40: #{byol_forward.3} parent=11 // pred_fallthru
        _
      // Predicated region
      $region41: #{byol_forward.3} parent=11 // pred_check
        %p519 = pneg %p221
      $region42: #{byol_forward.3} parent=11 // pred_check_branch
        %521 = sbr.rel (%p519) target = $region44
      $region43: #{byol_forward.3} parent=11 // pred_region
        _
      $region44: #{byol_forward.3} parent=11 // pred_fallthru
        _
      // Predicated region
      $region45: #{byol_forward.3} parent=11 // pred_check
        %p522 = pneg %p242
      $region46: #{byol_forward.3} parent=11 // pred_check_branch
        %524 = sbr.rel (%p522) target = $region48
      $region47: #{byol_forward.3} parent=11 // pred_region
        _
      $region48: #{byol_forward.3} parent=11 // pred_fallthru
        _
      // Predicated region
      $region49: #{byol_forward.3} parent=11 // pred_check
        %p525 = pneg %p263
      $region50: #{byol_forward.3} parent=11 // pred_check_branch
        %527 = sbr.rel (%p525) target = $region52
      $region51: #{byol_forward.3} parent=11 // pred_region
        _
      $region52: #{byol_forward.3} parent=11 // pred_fallthru
        _
      // Predicated region
      $region53: #{byol_forward.3} parent=11 // pred_check
        %p528 = pneg %p284
      $region54: #{byol_forward.3} parent=11 // pred_check_branch
        %530 = sbr.rel (%p528) target = $region56
      $region55: #{byol_forward.3} parent=11 // pred_region
        _
      $region56: #{byol_forward.3} parent=11 // pred_fallthru
        _
      // Predicated region
      $region57: #{byol_forward.3} parent=11 // pred_check
        %p531 = pneg %p305
      $region58: #{byol_forward.3} parent=11 // pred_check_branch
        %533 = sbr.rel (%p531) target = $region60
      $region59: #{byol_forward.3} parent=11 // pred_region
        _
      $region60: #{byol_forward.3} parent=11 // pred_fallthru
        _
      // Predicated region
      $region61: #{byol_forward.3} parent=11 // pred_check
        %p534 = pneg %p326
      $region62: #{byol_forward.3} parent=11 // pred_check_branch
        %536 = sbr.rel (%p534) target = $region64
      $region63: #{byol_forward.3} parent=11 // pred_region
        _
      $region64: #{byol_forward.3} parent=11 // pred_fallthru
        _
      // Predicated region
      $region65: #{byol_forward.3} parent=11 // pred_check
        %p537 = pneg %p347
      $region66: #{byol_forward.3} parent=11 // pred_check_branch
        %539 = sbr.rel (%p537) target = $region68
      $region67: #{byol_forward.3} parent=11 // pred_region
        _
      $region68: #{byol_forward.3} parent=11 // pred_fallthru
        _
      // Predicated region
      $region69: #{byol_forward.3} parent=11 // pred_check
        %p540 = pneg %p368
      $region70: #{byol_forward.3} parent=11 // pred_check_branch
        %542 = sbr.rel (%p540) target = $region72
      $region71: #{byol_forward.3} parent=11 // pred_region
        _
      $region72: #{byol_forward.3} parent=11 // pred_fallthru
        _
      // Predicated region
      $region73: #{byol_forward.3} parent=11 // pred_check
        %p543 = pneg %p389
      $region74: #{byol_forward.3} parent=11 // pred_check_branch
        %545 = sbr.rel (%p543) target = $region76
      $region75: #{byol_forward.3} parent=11 // pred_region
        _
      $region76: #{byol_forward.3} parent=11 // pred_fallthru
        _
      // Predicated region
      $region77: #{byol_forward.3} parent=11 // pred_check
        %p546 = pneg %p410
      $region78: #{byol_forward.3} parent=11 // pred_check_branch
        %548 = sbr.rel (%p546) target = $region80
      $region79: #{byol_forward.3} parent=11 // pred_region
        _
      $region80: #{byol_forward.3} parent=11 // pred_fallthru
        _
      // Predicated region
      $region81: #{byol_forward.3} parent=11 // pred_check
        %p549 = pneg %p431
      $region82: #{byol_forward.3} parent=11 // pred_check_branch
        %551 = sbr.rel (%p549) target = $region84
      $region83: #{byol_forward.3} parent=11 // pred_region
        _
      $region84: #{byol_forward.3} parent=11 // pred_fallthru
        _
    $region12: #{byol_forward.3} parent=5 // pred_fallthru
      _
    %p552 = scmp.lt.s32.totalorder %s27, 2
    // Predicated region
    $region85: #{byol_forward.3} parent=5 // pred_check
      %p553 = pneg %p552
    $region86: #{byol_forward.3} parent=5 // pred_check_branch
      %555 = sbr.rel (%p553) target = $region88
    $region87: #{byol_forward.3} parent=5 // pred_region
      // Predicated region
      $region89: #{byol_forward.3} parent=87 // pred_check
        %p556 = pneg %p47
      $region90: #{byol_forward.3} parent=87 // pred_check_branch
        %558 = sbr.rel (%p556) target = $region92
      $region91: #{byol_forward.3} parent=87 // pred_region
        %p559 = scmp.lt.s32.totalorder %s27, 1
        %s560 = scalar_select %p559, %s27, 1
        %s561 = smul.addr %s560, 8
        %s562 = smul.addr %s561, 8
        %s563 = scalar_lea.vmem %s0, %s562
      $region92: #{byol_forward.3} parent=87 // pred_fallthru
        _
    $region88: #{byol_forward.3} parent=5 // pred_fallthru
      _
    %p564 = scmp.le.s32.totalorder 1, %s27
    %p565 = scmp.lt.s32.totalorder %s27, 3
    %p566 = pnand %p564, %p565
    %p567 = pneg %p566
    // Predicated region
    $region93: #{byol_forward.3} parent=5 // pred_check
      _
    $region94: #{byol_forward.3} parent=5 // pred_check_branch
      %569 = sbr.rel (%p566) target = $region96
    $region95: #{byol_forward.3} parent=5 // pred_region
      %s570 = ssub.s32 %s27, 1
      %p571 = scmp.lt.s32.totalorder %s32, 1
      %s572 = scalar_select %p571, %s32, 1
      %s573 = smul.addr %s572, 8
      %s574 = smul.addr %s573, 8
      %s575 = scalar_lea.vmem %s0, %s574
      %p576 = pneg %p53
      %p577 = pneg %p50
      %p578 = pneg %p74
      %p579 = pneg %p71
      %p580 = pneg %p95
      %p581 = pneg %p92
      %p582 = pneg %p116
      %p583 = pneg %p113
      %p584 = pneg %p137
      %p585 = pneg %p134
      %p586 = pneg %p158
      %p587 = pneg %p155
      %p588 = pneg %p179
      %p589 = pneg %p176
      %p590 = pneg %p200
      %p591 = pneg %p197
      %p592 = pneg %p221
      %p593 = pneg %p218
      %p594 = pneg %p242
      %p595 = pneg %p239
      %p596 = pneg %p263
      %p597 = pneg %p260
      %p598 = pneg %p284
      %p599 = pneg %p281
      %p600 = pneg %p305
      %p601 = pneg %p302
      %p602 = pneg %p326
      %p603 = pneg %p323
      %p604 = pneg %p347
      %p605 = pneg %p344
      %p606 = pneg %p368
      %p607 = pneg %p365
      %p608 = pneg %p389
      %p609 = pneg %p386
      %p610 = pneg %p410
      %p611 = pneg %p407
      %p612 = pneg %p431
      %p613 = pneg %p428
      %p614 = pneg %p457
      %p615 = pneg %p454
      %p616 = scmp.lt.s32.totalorder %s32, 1
      %s617 = scalar_select %p616, %s32, 1
      %s618 = smul.addr %s617, 4
      %s619 = scalar_lea.vmem %s19, %s618
      %p620 = pneg %p483
      %p621 = pneg %p480
      %p622 = scmp.lt.s32.totalorder %s32, 1
      %s623 = scalar_select %p622, %s32, 1
      %s624 = smul.addr %s623, 4
      %s625 = scalar_lea.vmem %s20, %s624
      %p626 = scmp.lt.s32.totalorder %s32, 1
      %s627 = scalar_select %p626, %s32, 1
      %s628 = smul.addr %s627, 8
      %s629 = smul.addr %s628, 8
      %s630 = scalar_lea.vmem %s0, %s629
      %p631 = scmp.lt.s32.totalorder %s32, 1
      %s632 = scalar_select %p631, %s32, 1
      %s633 = smul.addr %s632, 4
      %s634 = scalar_lea.vmem %s19, %s633
      %p635 = scmp.lt.s32.totalorder %s32, 1
      %s636 = scalar_select %p635, %s32, 1
      %s637 = smul.addr %s636, 4
      %s638 = scalar_lea.vmem %s20, %s637
      %v639 = vld [vmem:[%s630] sm:$0xff]
      %v640 = vld [vmem:[%s630 + $0x8] sm:$0xff]
      %v641 = vld [vmem:[%s630 + $0x10] sm:$0xff]
      %v642 = vld [vmem:[%s630 + $0x18] sm:$0xff]
      %v643 = vld [vmem:[%s630 + $0x20] sm:$0xff]
      %v644 = vld [vmem:[%s630 + $0x28] sm:$0xff]
      %v645 = vld [vmem:[%s630 + $0x30] sm:$0xff]
      %v646 = vld [vmem:[%s630 + $0x38] sm:$0xff]
      %v647 = vadd.f32 %v639, %v640
      %648 = vadd.xlane.f32.xlu0 %v647
      %v649 = vpop.xlane.xlu0 %648
      %v650 = vadd.f32 %v641, %v642
      %651 = vadd.xlane.f32.xlu0 %v650
      %v652 = vpop.xlane.xlu0 %651
      %v653 = vadd.f32 %v643, %v644
      %654 = vadd.xlane.f32.xlu0 %v653
      %v655 = vpop.xlane.xlu0 %654
      %v656 = vadd.f32 %v645, %v646
      %657 = vadd.xlane.f32.xlu0 %v656
      %v658 = vpop.xlane.xlu0 %657
      %v659 = vrcp.pop 256.0
      %v660 = vmul.f32 %v649, %v659
      %v661 = vmul.f32 %v652, %v659
      %v662 = vmul.f32 %v655, %v659
      %v663 = vmul.f32 %v658, %v659
      %v664 = vld [vmem:[%s1] sm:$0xff]
      %v665 = vld [vmem:[%s2] sm:$0x1]
      %v666 = vld [vmem:[%s3] sm:$0x1]
      %v667 = vld [vmem:[%s4] sm:$0x1]
      %v668 = vld [vmem:[%s5] sm:$0xff]
      %v669 = vld [vmem:[%s5 + $0x8] sm:$0xff]
      %v670 = vld [vmem:[%s5 + $0x10] sm:$0xff]
      %v671 = vld [vmem:[%s5 + $0x18] sm:$0xff]
      %v672 = vld [vmem:[%s6] sm:$0x1]
      %v674 = vlaneseq
      %v675 = vshrl.u32 %v674, 7
      %v676 = vsub.s32 0, %v675
      %v677 = vrot.slane %v665, %v676
      %v683 = vlaneseq
      %v684 = vand.u32 %v683, 127
      %v685 = vlaneseq
      %v686 = vshrl.u32 %v685, 7
      %v687 = vsub.s32 %v684, %v686
      %v688 = vrot.slane %v660, %v687
      %v689 = vlaneseq
      %v690 = vshrl.u32 %v689, 7
      %v691 = vsub.s32 %v684, %v690
      %v692 = vrot.slane %v661, %v691
      %v693 = vlaneseq
      %v694 = vshrl.u32 %v693, 7
      %v695 = vsub.s32 %v684, %v694
      %v696 = vrot.slane %v662, %v695
      %v697 = vlaneseq
      %v698 = vshrl.u32 %v697, 7
      %v699 = vsub.s32 %v684, %v698
      %v700 = vrot.slane %v663, %v699
      %vm701 = vcmask 1041409
      %v702 = vsel %vm701, %v692, %v688
      %vm703 = vcmask 1042434
      %v704 = vsel %vm703, %v696, %v702
      %vm705 = vcmask 1043459
      %v706 = vsel %vm705, %v700, %v704
      %vm707 = vcmask 64512
      %v708 = vsel %vm707, %v706, 0
      %710 = vmatprep.subr.mxu0 0.0
      %711 = vmatpush1.msra.mxu0 %v664
      %712 = vmatprep.subr.mxu0 0.0
      %713 = vmatpush1.msra.mxu0 0.0
      %714 = vmatprep.subr.mxu0 0.0
      %715 = vmatpush1.msra.mxu0 0.0
      %716 = vmatprep.subr.mxu0 0.0
      %717 = vmatpush1.msra.mxu0 0.0
      %718 = vmatprep.subr.mxu0 0.0
      %719 = vmatpush1.msra.mxu0 0.0
      %720 = vmatprep.subr.mxu0 0.0
      %721 = vmatpush1.msra.mxu0 0.0
      %722 = vmatprep.subr.mxu0 0.0
      %723 = vmatpush1.msra.mxu0 0.0
      %724 = vmatprep.subr.mxu0 0.0
      %725 = vmatpush1.msra.mxu0 0.0
      %726 = vmatprep.subr.mxu0 0.0
      %727 = vmatpush1.msra.mxu0 0.0
      %728 = vmatprep.subr.mxu0 0.0
      %729 = vmatpush1.msra.mxu0 0.0
      %730 = vmatprep.subr.mxu0 0.0
      %731 = vmatpush1.msra.mxu0 0.0
      %732 = vmatprep.subr.mxu0 0.0
      %733 = vmatpush1.msra.mxu0 0.0
      %734 = vmatprep.subr.mxu0 0.0
      %735 = vmatpush1.msra.mxu0 0.0
      %736 = vmatprep.subr.mxu0 0.0
      %737 = vmatpush1.msra.mxu0 0.0
      %738 = vmatprep.subr.mxu0 0.0
      %739 = vmatpush1.msra.mxu0 0.0
      %740 = vmatprep.subr.mxu0 0.0
      %741 = vmatpush1.msra.mxu0 0.0
      %742 = vmatprep.subr.mxu0 0.0
      %743 = vmatpush1.msra.mxu0 0.0
      %744 = vmatprep.subr.mxu0 0.0
      %745 = vmatpush1.msra.mxu0 0.0
      %746 = vmatprep.subr.mxu0 0.0
      %747 = vmatpush1.msra.mxu0 0.0
      %748 = vmatprep.subr.mxu0 0.0
      %749 = vmatpush1.msra.mxu0 0.0
      %750 = vmatprep.subr.mxu0 0.0
      %751 = vmatpush1.msra.mxu0 0.0
      %752 = vmatprep.subr.mxu0 0.0
      %753 = vmatpush1.msra.mxu0 0.0
      %754 = vmatprep.subr.mxu0 0.0
      %755 = vmatpush1.msra.mxu0 0.0
      %756 = vmatprep.subr.mxu0 0.0
      %757 = vmatpush1.msra.mxu0 0.0
      %758 = vmatprep.subr.mxu0 0.0
      %759 = vmatpush1.msra.mxu0 0.0
      %760 = vmatprep.subr.mxu0 0.0
      %761 = vmatpush1.msra.mxu0 0.0
      %762 = vmatprep.subr.mxu0 0.0
      %763 = vmatpush1.msra.mxu0 0.0
      %764 = vmatprep.subr.mxu0 0.0
      %765 = vmatpush1.msra.mxu0 0.0
      %766 = vmatprep.subr.mxu0 0.0
      %767 = vmatpush1.msra.mxu0 0.0
      %768 = vmatprep.subr.mxu0 0.0
      %769 = vmatpush1.msra.mxu0 0.0
      %770 = vmatprep.subr.mxu0 0.0
      %771 = vmatpush1.msra.mxu0 0.0
      %772 = vmatprep.subr.mxu0 0.0
      %773 = vmatpush1.msra.mxu0 0.0
      %774 = vmatprep.mubr.f32.mxu0 0.0
      %775 = vmatmul.mubr.f32.gmra.mrb[0].mxu0 %v708
      %v776 = vpop.f32.mrb[0].mxu0
      %v777 = vadd.f32 %v677, %v776
      %v778 = vpop.f32.mrb[0].mxu0
      %779 = vdwg.mxu0
      %vm780 = vcmask 257024
      %v781 = vsel %vm780, %v777, 0.0
      %v782 = vrot.slane %v781, 4
      %v783 = vadd.f32 %v781, %v782
      %v784 = vrot.slane %v783, 2
      %v785 = vadd.f32 %v783, %v784
      %v786 = vrot.slane %v785, 1
      %v787 = vadd.f32 %v785, %v786
      %v788 = vrcp.pop 4.0
      %v789 = vmul.f32 %v787, %v788
      %v790 = vmul.f32 %v777, %v777
      %v791 = vsel %vm780, %v790, 0.0
      %v792 = vrot.slane %v791, 4
      %v793 = vadd.f32 %v791, %v792
      %v794 = vrot.slane %v793, 2
      %v795 = vadd.f32 %v793, %v794
      %v796 = vrot.slane %v795, 1
      %v797 = vadd.f32 %v795, %v796
      %v798 = vmul.f32 %v797, %v788
      %v799 = vmul.f32 %v789, %v789
      %v800 = vsub.f32 %v798, %v799
      %v801 = vsub.f32 %v777, %v789
      %v802 = vadd.f32 %v800, 1e-05
      %v803 = vrsqrt.pop %v802
      %v804 = vmul.f32 %v801, %v803
      %v806 = vlaneseq
      %v807 = vshrl.u32 %v806, 7
      %v808 = vsub.s32 0, %v807
      %v809 = vrot.slane %v666, %v808
      %v811 = vmul.f32 %v804, %v809
      %v813 = vlaneseq
      %v814 = vshrl.u32 %v813, 7
      %v815 = vsub.s32 0, %v814
      %v816 = vrot.slane %v667, %v815
      %v818 = vadd.f32 %v811, %v816
      %v819 = vmax.f32 %v818, 0.0
      %v821 = vlaneseq
      %v822 = vshrl.u32 %v821, 7
      %v823 = vsub.s32 0, %v822
      %v824 = vrot.slane %v672, %v823
      %vm826 = vcmask 261120
      %v828 = vsel %vm826, %v819, 0
      %830 = vmatprep.subr.mxu0 0.0
      %831 = vmatpush1.msra.mxu0 %v668
      %832 = vmatprep.subr.mxu0 0.0
      %833 = vmatpush1.msra.mxu0 %v669
      %834 = vmatprep.subr.mxu0 0.0
      %835 = vmatpush1.msra.mxu0 %v670
      %836 = vmatprep.subr.mxu0 0.0
      %837 = vmatpush1.msra.mxu0 %v671
      %838 = vmatprep.subr.mxu0 0.0
      %839 = vmatpush1.msra.mxu0 0.0
      %840 = vmatprep.subr.mxu0 0.0
      %841 = vmatpush1.msra.mxu0 0.0
      %842 = vmatprep.subr.mxu0 0.0
      %843 = vmatpush1.msra.mxu0 0.0
      %844 = vmatprep.subr.mxu0 0.0
      %845 = vmatpush1.msra.mxu0 0.0
      %846 = vmatprep.subr.mxu0 0.0
      %847 = vmatpush1.msra.mxu0 0.0
      %848 = vmatprep.subr.mxu0 0.0
      %849 = vmatpush1.msra.mxu0 0.0
      %850 = vmatprep.subr.mxu0 0.0
      %851 = vmatpush1.msra.mxu0 0.0
      %852 = vmatprep.subr.mxu0 0.0
      %853 = vmatpush1.msra.mxu0 0.0
      %854 = vmatprep.subr.mxu0 0.0
      %855 = vmatpush1.msra.mxu0 0.0
      %856 = vmatprep.subr.mxu0 0.0
      %857 = vmatpush1.msra.mxu0 0.0
      %858 = vmatprep.subr.mxu0 0.0
      %859 = vmatpush1.msra.mxu0 0.0
      %860 = vmatprep.subr.mxu0 0.0
      %861 = vmatpush1.msra.mxu0 0.0
      %862 = vmatprep.subr.mxu0 0.0
      %863 = vmatpush1.msra.mxu0 0.0
      %864 = vmatprep.subr.mxu0 0.0
      %865 = vmatpush1.msra.mxu0 0.0
      %866 = vmatprep.subr.mxu0 0.0
      %867 = vmatpush1.msra.mxu0 0.0
      %868 = vmatprep.subr.mxu0 0.0
      %869 = vmatpush1.msra.mxu0 0.0
      %870 = vmatprep.subr.mxu0 0.0
      %871 = vmatpush1.msra.mxu0 0.0
      %872 = vmatprep.subr.mxu0 0.0
      %873 = vmatpush1.msra.mxu0 0.0
      %874 = vmatprep.subr.mxu0 0.0
      %875 = vmatpush1.msra.mxu0 0.0
      %876 = vmatprep.subr.mxu0 0.0
      %877 = vmatpush1.msra.mxu0 0.0
      %878 = vmatprep.subr.mxu0 0.0
      %879 = vmatpush1.msra.mxu0 0.0
      %880 = vmatprep.subr.mxu0 0.0
      %881 = vmatpush1.msra.mxu0 0.0
      %882 = vmatprep.subr.mxu0 0.0
      %883 = vmatpush1.msra.mxu0 0.0
      %884 = vmatprep.subr.mxu0 0.0
      %885 = vmatpush1.msra.mxu0 0.0
      %886 = vmatprep.subr.mxu0 0.0
      %887 = vmatpush1.msra.mxu0 0.0
      %888 = vmatprep.subr.mxu0 0.0
      %889 = vmatpush1.msra.mxu0 0.0
      %890 = vmatprep.subr.mxu0 0.0
      %891 = vmatpush1.msra.mxu0 0.0
      %892 = vmatprep.subr.mxu0 0.0
      %893 = vmatpush1.msra.mxu0 0.0
      %894 = vmatprep.mubr.f32.mxu0 0.0
      %895 = vmatmul.mubr.f32.gmra.mrb[0].mxu0 %v828
      %v896 = vpop.f32.mrb[0].mxu0
      %v897 = vadd.f32 %v824, %v896
      %v898 = vpop.f32.mrb[0].mxu0
      %899 = vdwg.mxu0
      %v900 = vld [vmem:[%s13] sm:$0xff]
      %v901 = vld [vmem:[%s13 + $0x8] sm:$0xff]
      %v902 = vld [vmem:[%s13 + $0x10] sm:$0xff]
      %v903 = vld [vmem:[%s13 + $0x18] sm:$0xff]
      %v904 = vld [vmem:[%s13 + $0x20] sm:$0xff]
      %v905 = vld [vmem:[%s13 + $0x28] sm:$0xff]
      %v906 = vld [vmem:[%s13 + $0x30] sm:$0xff]
      %v907 = vld [vmem:[%s13 + $0x38] sm:$0xff]
      %v908 = vld [vmem:[%s13 + $0x40] sm:$0xff]
      %v909 = vld [vmem:[%s13 + $0x48] sm:$0xff]
      %v910 = vld [vmem:[%s13 + $0x50] sm:$0xff]
      %v911 = vld [vmem:[%s13 + $0x58] sm:$0xff]
      %v912 = vld [vmem:[%s13 + $0x60] sm:$0xff]
      %v913 = vld [vmem:[%s13 + $0x68] sm:$0xff]
      %v914 = vld [vmem:[%s13 + $0x70] sm:$0xff]
      %v915 = vld [vmem:[%s13 + $0x78] sm:$0xff]
      %v916 = vld [vmem:[%s14] sm:$0x1]
      %v917 = vld [vmem:[%s15] sm:$0x1]
      %v918 = vld [vmem:[%s16] sm:$0x1]
      %v919 = vld [vmem:[%s17] sm:$0xff]
      %v920 = vld [vmem:[%s17 + $0x8] sm:$0xff]
      %v921 = vld [vmem:[%s17 + $0x10] sm:$0xff]
      %v922 = vld [vmem:[%s17 + $0x18] sm:$0xff]
      %v923 = vld [vmem:[%s18] sm:$0x1]
      %v925 = vlaneseq
      %v926 = vshrl.u32 %v925, 7
      %v927 = vsub.s32 0, %v926
      %v928 = vrot.slane %v916, %v927
      %930 = vmatprep.subr.mxu0 0.0
      %931 = vmatpush1.msra.mxu0 %v900
      %932 = vmatprep.subr.mxu0 0.0
      %933 = vmatpush1.msra.mxu0 %v901
      %934 = vmatprep.subr.mxu0 0.0
      %935 = vmatpush1.msra.mxu0 %v902
      %936 = vmatprep.subr.mxu0 0.0
      %937 = vmatpush1.msra.mxu0 %v903
      %938 = vmatprep.subr.mxu0 0.0
      %939 = vmatpush1.msra.mxu0 %v904
      %940 = vmatprep.subr.mxu0 0.0
      %941 = vmatpush1.msra.mxu0 %v905
      %942 = vmatprep.subr.mxu0 0.0
      %943 = vmatpush1.msra.mxu0 %v906
      %944 = vmatprep.subr.mxu0 0.0
      %945 = vmatpush1.msra.mxu0 %v907
      %946 = vmatprep.subr.mxu0 0.0
      %947 = vmatpush1.msra.mxu0 %v908
      %948 = vmatprep.subr.mxu0 0.0
      %949 = vmatpush1.msra.mxu0 %v909
      %950 = vmatprep.subr.mxu0 0.0
      %951 = vmatpush1.msra.mxu0 %v910
      %952 = vmatprep.subr.mxu0 0.0
      %953 = vmatpush1.msra.mxu0 %v911
      %954 = vmatprep.subr.mxu0 0.0
      %955 = vmatpush1.msra.mxu0 %v912
      %956 = vmatprep.subr.mxu0 0.0
      %957 = vmatpush1.msra.mxu0 %v913
      %958 = vmatprep.subr.mxu0 0.0
      %959 = vmatpush1.msra.mxu0 %v914
      %960 = vmatprep.subr.mxu0 0.0
      %961 = vmatpush1.msra.mxu0 %v915
      %962 = vmatprep.subr.mxu0 0.0
      %963 = vmatpush1.msra.mxu0 0.0
      %964 = vmatprep.subr.mxu0 0.0
      %965 = vmatpush1.msra.mxu0 0.0
      %966 = vmatprep.subr.mxu0 0.0
      %967 = vmatpush1.msra.mxu0 0.0
      %968 = vmatprep.subr.mxu0 0.0
      %969 = vmatpush1.msra.mxu0 0.0
      %970 = vmatprep.subr.mxu0 0.0
      %971 = vmatpush1.msra.mxu0 0.0
      %972 = vmatprep.subr.mxu0 0.0
      %973 = vmatpush1.msra.mxu0 0.0
      %974 = vmatprep.subr.mxu0 0.0
      %975 = vmatpush1.msra.mxu0 0.0
      %976 = vmatprep.subr.mxu0 0.0
      %977 = vmatpush1.msra.mxu0 0.0
      %978 = vmatprep.subr.mxu0 0.0
      %979 = vmatpush1.msra.mxu0 0.0
      %980 = vmatprep.subr.mxu0 0.0
      %981 = vmatpush1.msra.mxu0 0.0
      %982 = vmatprep.subr.mxu0 0.0
      %983 = vmatpush1.msra.mxu0 0.0
      %984 = vmatprep.subr.mxu0 0.0
      %985 = vmatpush1.msra.mxu0 0.0
      %986 = vmatprep.subr.mxu0 0.0
      %987 = vmatpush1.msra.mxu0 0.0
      %988 = vmatprep.subr.mxu0 0.0
      %989 = vmatpush1.msra.mxu0 0.0
      %990 = vmatprep.subr.mxu0 0.0
      %991 = vmatpush1.msra.mxu0 0.0
      %992 = vmatprep.subr.mxu0 0.0
      %993 = vmatpush1.msra.mxu0 0.0
      %994 = vmatprep.mubr.f32.mxu0 0.0
      %995 = vmatmul.mubr.f32.gmra.mrb[0].mxu0 %v897
      %v996 = vpop.f32.mrb[0].mxu0
      %v997 = vadd.f32 %v928, %v996
      %v998 = vpop.f32.mrb[0].mxu0
      %999 = vdwg.mxu0
      %v1000 = vsel %vm780, %v997, 0.0
      %v1001 = vrot.slane %v1000, 4
      %v1002 = vadd.f32 %v1000, %v1001
      %v1003 = vrot.slane %v1002, 2
      %v1004 = vadd.f32 %v1002, %v1003
      %v1005 = vrot.slane %v1004, 1
      %v1006 = vadd.f32 %v1004, %v1005
      %v1007 = vmul.f32 %v1006, %v788
      %v1008 = vmul.f32 %v997, %v997
      %v1009 = vsel %vm780, %v1008, 0.0
      %v1010 = vrot.slane %v1009, 4
      %v1011 = vadd.f32 %v1009, %v1010
      %v1012 = vrot.slane %v1011, 2
      %v1013 = vadd.f32 %v1011, %v1012
      %v1014 = vrot.slane %v1013, 1
      %v1015 = vadd.f32 %v1013, %v1014
      %v1016 = vmul.f32 %v1015, %v788
      %v1017 = vmul.f32 %v1007, %v1007
      %v1018 = vsub.f32 %v1016, %v1017
      %v1019 = vsub.f32 %v997, %v1007
      %v1020 = vadd.f32 %v1018, 1e-05
      %v1021 = vrsqrt.pop %v1020
      %v1022 = vmul.f32 %v1019, %v1021
      %v1024 = vlaneseq
      %v1025 = vshrl.u32 %v1024, 7
      %v1026 = vsub.s32 0, %v1025
      %v1027 = vrot.slane %v917, %v1026
      %v1029 = vmul.f32 %v1022, %v1027
      %v1031 = vlaneseq
      %v1032 = vshrl.u32 %v1031, 7
      %v1033 = vsub.s32 0, %v1032
      %v1034 = vrot.slane %v918, %v1033
      %v1036 = vadd.f32 %v1029, %v1034
      %v1037 = vmax.f32 %v1036, 0.0
      %v1039 = vlaneseq
      %v1040 = vshrl.u32 %v1039, 7
      %v1041 = vsub.s32 0, %v1040
      %v1042 = vrot.slane %v923, %v1041
      %v1045 = vsel %vm826, %v1037, 0
      %1047 = vmatprep.subr.mxu0 0.0
      %1048 = vmatpush1.msra.mxu0 %v919
      %1049 = vmatprep.subr.mxu0 0.0
      %1050 = vmatpush1.msra.mxu0 %v920
      %1051 = vmatprep.subr.mxu0 0.0
      %1052 = vmatpush1.msra.mxu0 %v921
      %1053 = vmatprep.subr.mxu0 0.0
      %1054 = vmatpush1.msra.mxu0 %v922
      %1055 = vmatprep.subr.mxu0 0.0
      %1056 = vmatpush1.msra.mxu0 0.0
      %1057 = vmatprep.subr.mxu0 0.0
      %1058 = vmatpush1.msra.mxu0 0.0
      %1059 = vmatprep.subr.mxu0 0.0
      %1060 = vmatpush1.msra.mxu0 0.0
      %1061 = vmatprep.subr.mxu0 0.0
      %1062 = vmatpush1.msra.mxu0 0.0
      %1063 = vmatprep.subr.mxu0 0.0
      %1064 = vmatpush1.msra.mxu0 0.0
      %1065 = vmatprep.subr.mxu0 0.0
      %1066 = vmatpush1.msra.mxu0 0.0
      %1067 = vmatprep.subr.mxu0 0.0
      %1068 = vmatpush1.msra.mxu0 0.0
      %1069 = vmatprep.subr.mxu0 0.0
      %1070 = vmatpush1.msra.mxu0 0.0
      %1071 = vmatprep.subr.mxu0 0.0
      %1072 = vmatpush1.msra.mxu0 0.0
      %1073 = vmatprep.subr.mxu0 0.0
      %1074 = vmatpush1.msra.mxu0 0.0
      %1075 = vmatprep.subr.mxu0 0.0
      %1076 = vmatpush1.msra.mxu0 0.0
      %1077 = vmatprep.subr.mxu0 0.0
      %1078 = vmatpush1.msra.mxu0 0.0
      %1079 = vmatprep.subr.mxu0 0.0
      %1080 = vmatpush1.msra.mxu0 0.0
      %1081 = vmatprep.subr.mxu0 0.0
      %1082 = vmatpush1.msra.mxu0 0.0
      %1083 = vmatprep.subr.mxu0 0.0
      %1084 = vmatpush1.msra.mxu0 0.0
      %1085 = vmatprep.subr.mxu0 0.0
      %1086 = vmatpush1.msra.mxu0 0.0
      %1087 = vmatprep.subr.mxu0 0.0
      %1088 = vmatpush1.msra.mxu0 0.0
      %1089 = vmatprep.subr.mxu0 0.0
      %1090 = vmatpush1.msra.mxu0 0.0
      %1091 = vmatprep.subr.mxu0 0.0
      %1092 = vmatpush1.msra.mxu0 0.0
      %1093 = vmatprep.subr.mxu0 0.0
      %1094 = vmatpush1.msra.mxu0 0.0
      %1095 = vmatprep.subr.mxu0 0.0
      %1096 = vmatpush1.msra.mxu0 0.0
      %1097 = vmatprep.subr.mxu0 0.0
      %1098 = vmatpush1.msra.mxu0 0.0
      %1099 = vmatprep.subr.mxu0 0.0
      %1100 = vmatpush1.msra.mxu0 0.0
      %1101 = vmatprep.subr.mxu0 0.0
      %1102 = vmatpush1.msra.mxu0 0.0
      %1103 = vmatprep.subr.mxu0 0.0
      %1104 = vmatpush1.msra.mxu0 0.0
      %1105 = vmatprep.subr.mxu0 0.0
      %1106 = vmatpush1.msra.mxu0 0.0
      %1107 = vmatprep.subr.mxu0 0.0
      %1108 = vmatpush1.msra.mxu0 0.0
      %1109 = vmatprep.subr.mxu0 0.0
      %1110 = vmatpush1.msra.mxu0 0.0
      %1111 = vmatprep.mubr.f32.mxu0 0.0
      %1112 = vmatmul.mubr.f32.gmra.mrb[0].mxu0 %v1045
      %v1113 = vpop.f32.mrb[0].mxu0
      %v1114 = vadd.f32 %v1042, %v1113
      %v1115 = vpop.f32.mrb[0].mxu0
      %1116 = vdwg.mxu0
      %1117 = vst [vmem:[%s634] sm:$0xf] %v1114
      %v1118 = vld [vmem:[%s7] sm:$0xff]
      %v1119 = vld [vmem:[%s8] sm:$0x1]
      %v1120 = vld [vmem:[%s9] sm:$0x1]
      %v1121 = vld [vmem:[%s10] sm:$0x1]
      %v1122 = vld [vmem:[%s11] sm:$0xff]
      %v1123 = vld [vmem:[%s11 + $0x8] sm:$0xff]
      %v1124 = vld [vmem:[%s11 + $0x10] sm:$0xff]
      %v1125 = vld [vmem:[%s11 + $0x18] sm:$0xff]
      %v1126 = vld [vmem:[%s12] sm:$0x1]
      %v1128 = vlaneseq
      %v1129 = vshrl.u32 %v1128, 7
      %v1130 = vsub.s32 0, %v1129
      %v1131 = vrot.slane %v1119, %v1130
      %1133 = vmatprep.subr.mxu0 0.0
      %1134 = vmatpush1.msra.mxu0 %v1118
      %1135 = vmatprep.subr.mxu0 0.0
      %1136 = vmatpush1.msra.mxu0 0.0
      %1137 = vmatprep.subr.mxu0 0.0
      %1138 = vmatpush1.msra.mxu0 0.0
      %1139 = vmatprep.subr.mxu0 0.0
      %1140 = vmatpush1.msra.mxu0 0.0
      %1141 = vmatprep.subr.mxu0 0.0
      %1142 = vmatpush1.msra.mxu0 0.0
      %1143 = vmatprep.subr.mxu0 0.0
      %1144 = vmatpush1.msra.mxu0 0.0
      %1145 = vmatprep.subr.mxu0 0.0
      %1146 = vmatpush1.msra.mxu0 0.0
      %1147 = vmatprep.subr.mxu0 0.0
      %1148 = vmatpush1.msra.mxu0 0.0
      %1149 = vmatprep.subr.mxu0 0.0
      %1150 = vmatpush1.msra.mxu0 0.0
      %1151 = vmatprep.subr.mxu0 0.0
      %1152 = vmatpush1.msra.mxu0 0.0
      %1153 = vmatprep.subr.mxu0 0.0
      %1154 = vmatpush1.msra.mxu0 0.0
      %1155 = vmatprep.subr.mxu0 0.0
      %1156 = vmatpush1.msra.mxu0 0.0
      %1157 = vmatprep.subr.mxu0 0.0
      %1158 = vmatpush1.msra.mxu0 0.0
      %1159 = vmatprep.subr.mxu0 0.0
      %1160 = vmatpush1.msra.mxu0 0.0
      %1161 = vmatprep.subr.mxu0 0.0
      %1162 = vmatpush1.msra.mxu0 0.0
      %1163 = vmatprep.subr.mxu0 0.0
      %1164 = vmatpush1.msra.mxu0 0.0
      %1165 = vmatprep.subr.mxu0 0.0
      %1166 = vmatpush1.msra.mxu0 0.0
      %1167 = vmatprep.subr.mxu0 0.0
      %1168 = vmatpush1.msra.mxu0 0.0
      %1169 = vmatprep.subr.mxu0 0.0
      %1170 = vmatpush1.msra.mxu0 0.0
      %1171 = vmatprep.subr.mxu0 0.0
      %1172 = vmatpush1.msra.mxu0 0.0
      %1173 = vmatprep.subr.mxu0 0.0
      %1174 = vmatpush1.msra.mxu0 0.0
      %1175 = vmatprep.subr.mxu0 0.0
      %1176 = vmatpush1.msra.mxu0 0.0
      %1177 = vmatprep.subr.mxu0 0.0
      %1178 = vmatpush1.msra.mxu0 0.0
      %1179 = vmatprep.subr.mxu0 0.0
      %1180 = vmatpush1.msra.mxu0 0.0
      %1181 = vmatprep.subr.mxu0 0.0
      %1182 = vmatpush1.msra.mxu0 0.0
      %1183 = vmatprep.subr.mxu0 0.0
      %1184 = vmatpush1.msra.mxu0 0.0
      %1185 = vmatprep.subr.mxu0 0.0
      %1186 = vmatpush1.msra.mxu0 0.0
      %1187 = vmatprep.subr.mxu0 0.0
      %1188 = vmatpush1.msra.mxu0 0.0
      %1189 = vmatprep.subr.mxu0 0.0
      %1190 = vmatpush1.msra.mxu0 0.0
      %1191 = vmatprep.subr.mxu0 0.0
      %1192 = vmatpush1.msra.mxu0 0.0
      %1193 = vmatprep.subr.mxu0 0.0
      %1194 = vmatpush1.msra.mxu0 0.0
      %1195 = vmatprep.subr.mxu0 0.0
      %1196 = vmatpush1.msra.mxu0 0.0
      %1197 = vmatprep.mubr.f32.mxu0 0.0
      %1198 = vmatmul.mubr.f32.gmra.mrb[0].mxu0 %v708
      %v1199 = vpop.f32.mrb[0].mxu0
      %v1200 = vadd.f32 %v1131, %v1199
      %v1201 = vpop.f32.mrb[0].mxu0
      %1202 = vdwg.mxu0
      %v1203 = vsel %vm780, %v1200, 0.0
      %v1204 = vrot.slane %v1203, 4
      %v1205 = vadd.f32 %v1203, %v1204
      %v1206 = vrot.slane %v1205, 2
      %v1207 = vadd.f32 %v1205, %v1206
      %v1208 = vrot.slane %v1207, 1
      %v1209 = vadd.f32 %v1207, %v1208
      %v1210 = vmul.f32 %v1209, %v788
      %v1211 = vmul.f32 %v1200, %v1200
      %v1212 = vsel %vm780, %v1211, 0.0
      %v1213 = vrot.slane %v1212, 4
      %v1214 = vadd.f32 %v1212, %v1213
      %v1215 = vrot.slane %v1214, 2
      %v1216 = vadd.f32 %v1214, %v1215
      %v1217 = vrot.slane %v1216, 1
      %v1218 = vadd.f32 %v1216, %v1217
      %v1219 = vmul.f32 %v1218, %v788
      %v1220 = vmul.f32 %v1210, %v1210
      %v1221 = vsub.f32 %v1219, %v1220
      %v1222 = vsub.f32 %v1200, %v1210
      %v1223 = vadd.f32 %v1221, 1e-05
      %v1224 = vrsqrt.pop %v1223
      %v1225 = vmul.f32 %v1222, %v1224
      %v1227 = vlaneseq
      %v1228 = vshrl.u32 %v1227, 7
      %v1229 = vsub.s32 0, %v1228
      %v1230 = vrot.slane %v1120, %v1229
      %v1232 = vmul.f32 %v1225, %v1230
      %v1234 = vlaneseq
      %v1235 = vshrl.u32 %v1234, 7
      %v1236 = vsub.s32 0, %v1235
      %v1237 = vrot.slane %v1121, %v1236
      %v1239 = vadd.f32 %v1232, %v1237
      %v1240 = vmax.f32 %v1239, 0.0
      %v1242 = vlaneseq
      %v1243 = vshrl.u32 %v1242, 7
      %v1244 = vsub.s32 0, %v1243
      %v1245 = vrot.slane %v1126, %v1244
      %v1248 = vsel %vm826, %v1240, 0
      %1250 = vmatprep.subr.mxu0 0.0
      %1251 = vmatpush1.msra.mxu0 %v1122
      %1252 = vmatprep.subr.mxu0 0.0
      %1253 = vmatpush1.msra.mxu0 %v1123
      %1254 = vmatprep.subr.mxu0 0.0
      %1255 = vmatpush1.msra.mxu0 %v1124
      %1256 = vmatprep.subr.mxu0 0.0
      %1257 = vmatpush1.msra.mxu0 %v1125
      %1258 = vmatprep.subr.mxu0 0.0
      %1259 = vmatpush1.msra.mxu0 0.0
      %1260 = vmatprep.subr.mxu0 0.0
      %1261 = vmatpush1.msra.mxu0 0.0
      %1262 = vmatprep.subr.mxu0 0.0
      %1263 = vmatpush1.msra.mxu0 0.0
      %1264 = vmatprep.subr.mxu0 0.0
      %1265 = vmatpush1.msra.mxu0 0.0
      %1266 = vmatprep.subr.mxu0 0.0
      %1267 = vmatpush1.msra.mxu0 0.0
      %1268 = vmatprep.subr.mxu0 0.0
      %1269 = vmatpush1.msra.mxu0 0.0
      %1270 = vmatprep.subr.mxu0 0.0
      %1271 = vmatpush1.msra.mxu0 0.0
      %1272 = vmatprep.subr.mxu0 0.0
      %1273 = vmatpush1.msra.mxu0 0.0
      %1274 = vmatprep.subr.mxu0 0.0
      %1275 = vmatpush1.msra.mxu0 0.0
      %1276 = vmatprep.subr.mxu0 0.0
      %1277 = vmatpush1.msra.mxu0 0.0
      %1278 = vmatprep.subr.mxu0 0.0
      %1279 = vmatpush1.msra.mxu0 0.0
      %1280 = vmatprep.subr.mxu0 0.0
      %1281 = vmatpush1.msra.mxu0 0.0
      %1282 = vmatprep.subr.mxu0 0.0
      %1283 = vmatpush1.msra.mxu0 0.0
      %1284 = vmatprep.subr.mxu0 0.0
      %1285 = vmatpush1.msra.mxu0 0.0
      %1286 = vmatprep.subr.mxu0 0.0
      %1287 = vmatpush1.msra.mxu0 0.0
      %1288 = vmatprep.subr.mxu0 0.0
      %1289 = vmatpush1.msra.mxu0 0.0
      %1290 = vmatprep.subr.mxu0 0.0
      %1291 = vmatpush1.msra.mxu0 0.0
      %1292 = vmatprep.subr.mxu0 0.0
      %1293 = vmatpush1.msra.mxu0 0.0
      %1294 = vmatprep.subr.mxu0 0.0
      %1295 = vmatpush1.msra.mxu0 0.0
      %1296 = vmatprep.subr.mxu0 0.0
      %1297 = vmatpush1.msra.mxu0 0.0
      %1298 = vmatprep.subr.mxu0 0.0
      %1299 = vmatpush1.msra.mxu0 0.0
      %1300 = vmatprep.subr.mxu0 0.0
      %1301 = vmatpush1.msra.mxu0 0.0
      %1302 = vmatprep.subr.mxu0 0.0
      %1303 = vmatpush1.msra.mxu0 0.0
      %1304 = vmatprep.subr.mxu0 0.0
      %1305 = vmatpush1.msra.mxu0 0.0
      %1306 = vmatprep.subr.mxu0 0.0
      %1307 = vmatpush1.msra.mxu0 0.0
      %1308 = vmatprep.subr.mxu0 0.0
      %1309 = vmatpush1.msra.mxu0 0.0
      %1310 = vmatprep.subr.mxu0 0.0
      %1311 = vmatpush1.msra.mxu0 0.0
      %1312 = vmatprep.subr.mxu0 0.0
      %1313 = vmatpush1.msra.mxu0 0.0
      %1314 = vmatprep.mubr.f32.mxu0 0.0
      %1315 = vmatmul.mubr.f32.gmra.mrb[0].mxu0 %v1248
      %v1316 = vpop.f32.mrb[0].mxu0
      %v1317 = vadd.f32 %v1245, %v1316
      %v1318 = vpop.f32.mrb[0].mxu0
      %1319 = vdwg.mxu0
      %1320 = vst [vmem:[%s638] sm:$0xf] %v1317
      %p1321 = scmp.lt.s32.totalorder %s32, 1
      %s1322 = scalar_select %p1321, %s32, 1
      %s1323 = smul.addr %s1322, 4
      %s1324 = scalar_lea.vmem %s19, %s1323
      %p1325 = scmp.lt.s32.totalorder %s32, 1
      %s1326 = scalar_select %p1325, %s32, 1
      %s1327 = smul.addr %s1326, 4
      %s1328 = scalar_lea.vmem %s20, %s1327
      // Predicated region
      $region97: #{byol_forward.3} parent=95 // pred_check
        %p1329 = pneg %p454
      $region98: #{byol_forward.3} parent=95 // pred_check_branch
        %1331 = sbr.rel (%p1329) target = $region100
      $region99: #{byol_forward.3} parent=95 // pred_region
        _
      $region100: #{byol_forward.3} parent=95 // pred_fallthru
        _
      // Predicated region
      $region101: #{byol_forward.3} parent=95 // pred_check
        %p1332 = pneg %p480
      $region102: #{byol_forward.3} parent=95 // pred_check_branch
        %1334 = sbr.rel (%p1332) target = $region104
      $region103: #{byol_forward.3} parent=95 // pred_region
        _
      $region104: #{byol_forward.3} parent=95 // pred_fallthru
        _
    $region96: #{byol_forward.3} parent=5 // pred_fallthru
      _
    %p1335 = scmp.le.s32.totalorder 2, %s27
    // Predicated region
    $region105: #{byol_forward.3} parent=5 // pred_check
      %p1336 = pneg %p1335
    $region106: #{byol_forward.3} parent=5 // pred_check_branch
      %1338 = sbr.rel (%p1336) target = $region108
    $region107: #{byol_forward.3} parent=5 // pred_region
      %s1339 = ssub.s32 %s27, 2
      // Predicated region
      $region109: #{byol_forward.3} parent=107 // pred_check
        %p1340 = pneg %p460
      $region110: #{byol_forward.3} parent=107 // pred_check_branch
        %1342 = sbr.rel (%p1340) target = $region112
      $region111: #{byol_forward.3} parent=107 // pred_region
        %p1343 = scmp.lt.s32.totalorder %s33, 1
        %s1344 = scalar_select %p1343, %s33, 1
        %s1345 = smul.addr %s1344, 4
        %s1346 = scalar_lea.vmem %s19, %s1345
      $region112: #{byol_forward.3} parent=107 // pred_fallthru
        _
      // Predicated region
      $region113: #{byol_forward.3} parent=107 // pred_check
        %p1347 = pneg %p486
      $region114: #{byol_forward.3} parent=107 // pred_check_branch
        %1349 = sbr.rel (%p1347) target = $region116
      $region115: #{byol_forward.3} parent=107 // pred_region
        %p1350 = scmp.lt.s32.totalorder %s33, 1
        %s1351 = scalar_select %p1350, %s33, 1
        %s1352 = smul.addr %s1351, 4
        %s1353 = scalar_lea.vmem %s20, %s1352
      $region116: #{byol_forward.3} parent=107 // pred_fallthru
        _
    $region108: #{byol_forward.3} parent=5 // pred_fallthru
      _
  $region6: #{byol_forward.3} parent=0 // loop_footer
    %s31 = sadd.s32 1, %s27
  $region7: #{byol_forward.3} parent=0 // loop_footer_branch
    %26 = sbr.rel target = $region3
  $region8: #{byol_forward.3} parent=0 // loop_exit
    _

</llo_original>
